<compile_context>
chip_gen: v7x
topology: tpu7x:2x2x1
jax: 0.10.0
libtpu: 0.0.40
codegen_flags: <defaults>
</compile_context>

<pallas_src>
import functools
import math

import numpy as np
import jax
import jax.numpy as jnp
from jax.experimental import pallas as pl
from jax.experimental.pallas import tpu as pltpu

_BN_EPS = 1e-5


def _fused_kernel(x_ref, wide_ref, narrow_ref, w2v_ref, bias_ref, o_ref, *,
                  voters, wv_width, wm_width, input_size, wide_offs, narrow_offs):
    """Fused voter-MLP + main-MLP forward. Whole batch + all params live in VMEM."""
    B = x_ref.shape[0]
    vwv = voters * wv_width
    inv_pool = 1.0 / float(B * voters)   # voter BN pools over batch rows AND voter groups
    inv_rows = 1.0 / float(B)

    # Static (8-row-aligned) sub-views into the two packed constant slabs.
    o_w0v, o_w1v, o_gt = wide_offs
    o_g, o_wm0, o_wm1, o_wm2 = narrow_offs
    w0v = wide_ref[o_w0v:o_w0v + input_size, :]        # (input,      voters*Wv) block-diag
    w1v = wide_ref[o_w1v:o_w1v + vwv, :]               # (voters*Wv,  voters*Wv) block-diag
    gt = wide_ref[o_gt:o_gt + wv_width, :]             # (Wv, voters*Wv) stat scatter-back
    g = narrow_ref[o_g:o_g + vwv, :]                   # (voters*Wv, Wv) group-sum
    wm0 = narrow_ref[o_wm0:o_wm0 + voters, :]          # (voters, Wm)
    wm1 = narrow_ref[o_wm1:o_wm1 + wm_width, :]        # (Wm, Wm)
    wm2t = narrow_ref[o_wm2:o_wm2 + 1, :]              # (1, Wm) final layer (VPU path)
    b2v = bias_ref[0:1, :]                             # (1, voters)
    b2m = bias_ref[1:2, 0:1]                           # (1, 1)

    def bn_grouped(h):
        # Training-mode BatchNorm (biased var) with stats pooled over all B rows and all
        # `voters` lane groups (matches the original (B*voters, Wv) layout); group-sum /
        # broadcast-back via the tiny constant indicator matmuls G / G^T (MXU is idle here).
        s = jnp.sum(h, axis=0, keepdims=True)
        s2 = jnp.sum(h * h, axis=0, keepdims=True)
        mean = jnp.dot(s, g, preferred_element_type=jnp.float32) * inv_pool
        ex2 = jnp.dot(s2, g, preferred_element_type=jnp.float32) * inv_pool
        inv = jax.lax.rsqrt(ex2 - mean * mean + _BN_EPS)
        mean_b = jnp.dot(mean, gt, preferred_element_type=jnp.float32)
        inv_b = jnp.dot(inv, gt, preferred_element_type=jnp.float32)
        return (h - mean_b) * inv_b

    def bn_cols(h):
        # Plain per-column BatchNorm over the B batch rows (main stage).
        mean = jnp.sum(h, axis=0, keepdims=True) * inv_rows
        ex2 = jnp.sum(h * h, axis=0, keepdims=True) * inv_rows
        inv = jax.lax.rsqrt(ex2 - mean * mean + _BN_EPS)
        return (h - mean) * inv

    # ---- voter stage: block-diagonal, lane-dense (B, voters*Wv); the (B, voters)
    # intermediate never leaves vregs, no lane<->sublane reshape anywhere ----
    h = x_ref[...]
    h = jnp.maximum(bn_grouped(jnp.dot(h, w0v, preferred_element_type=jnp.float32)), 0.0)
    h = jnp.maximum(bn_grouped(jnp.dot(h, w1v, preferred_element_type=jnp.float32)), 0.0)
    v = jax.nn.sigmoid(
        jnp.dot(h, w2v_ref[...], preferred_element_type=jnp.float32) + b2v)  # (B, voters)

    # ---- main stage on (B, voters) ----
    m = jnp.maximum(bn_cols(jnp.dot(v, wm0, preferred_element_type=jnp.float32)), 0.0)
    m = jnp.maximum(bn_cols(jnp.dot(m, wm1, preferred_element_type=jnp.float32)), 0.0)
    # final (Wm, 1) layer: broadcast-multiply + lane reduce instead of an N=1 MXU matmul
    o_ref[...] = jax.nn.sigmoid(jnp.sum(m * wm2t, axis=1, keepdims=True) + b2m)


def _pad_rows8(a):
    pad = (-a.shape[0]) % 8
    return jnp.pad(a, ((0, pad), (0, 0))) if pad else a


def _pack_rows(arrays):
    """Stack equal-lane-width 2D arrays along sublanes, each 8-row aligned -> (pack, offsets)."""
    offs, padded, off = [], [], 0
    for a in arrays:
        a = _pad_rows8(a)
        offs.append(off)
        off += a.shape[0]
        padded.append(a)
    return jnp.concatenate(padded, axis=0), tuple(offs)


@functools.partial(jax.jit, static_argnums=(3,))
def forward(x, voter_params, main_params, voters_count):
    """Full SolutionModel.forward as a single fused Pallas kernel."""
    (wv0, _bv0), (wv1, _bv1), (wv2, bv2) = voter_params
    (wm0, _bm0), (wm1, _bm1), (wm2, bm2) = main_params
    # _bv0/_bv1/_bm0/_bm1 are mathematically dead: the non-affine BatchNorm after each
    # hidden Linear subtracts the per-column mean, exactly cancelling a constant bias.

    B, input_size = x.shape
    wv_width = wv0.shape[1]
    wm_width = wm0.shape[1]

    eye_v = jnp.eye(voters_count, dtype=jnp.float32)
    # Block-diagonal expansion of the (shared) per-voter weights, built once at trace time.
    w0v_blk = jnp.kron(eye_v, wv0)                     # (input,      voters*Wv)
    w1v_blk = jnp.kron(eye_v, wv1)                     # (voters*Wv,  voters*Wv)
    w2v_blk = jnp.kron(eye_v, wv2)                     # (voters*Wv,  voters)
    # Group-indicator matrix for pooled BN stats: G[v*Wv + f, f] = 1.
    g = jnp.tile(jnp.eye(wv_width, dtype=jnp.float32), (voters_count, 1))  # (voters*Wv, Wv)

    # Pack constants of equal lane width into two slabs -> fewer, larger input DMAs.
    wide, wide_offs = _pack_rows([w0v_blk, w1v_blk, g.T])    # lane width voters*Wv
    narrow, narrow_offs = _pack_rows([g, wm0, wm1, wm2.T])   # lane width Wv / Wm
    bias = jnp.concatenate(
        [jnp.tile(bv2, (1, voters_count)),                   # row 0: voter final-layer bias
         jnp.pad(bm2, ((0, 0), (0, voters_count - 1)))],     # row 1, lane 0: main final bias
        axis=0)                                              # (2, voters)

    kernel = functools.partial(
        _fused_kernel, voters=voters_count, wv_width=wv_width, wm_width=wm_width,
        input_size=input_size, wide_offs=wide_offs, narrow_offs=narrow_offs)
    vmem = lambda: pl.BlockSpec(memory_space=pltpu.MemorySpace.VMEM)
    # Single grid point: BatchNorm couples all batch rows, so the whole batch sits in one
    # VMEM block (well under a MiB at these widths).
    # TODO(synk): for very large B add a row grid with a two-pass (stats, then normalize)
    # scheme so the batch statistics stay exact across row tiles.
    return pl.pallas_call(
        kernel,
        out_shape=jax.ShapeDtypeStruct((B, 1), jnp.float32),
        in_specs=[vmem() for _ in range(5)],
        out_specs=vmem(),
    )(x, wide, narrow, w2v_blk, bias)


# ---------------- pure-JAX reference (original layout, with biases, two-pass BN) ----------------
def _mlp3_ref(h, params):
    (w0, b0), (w1, b1), (w2, b2) = params

    def bn(z):
        m = z.mean(0, keepdims=True)
        v = jnp.square(z - m).mean(0, keepdims=True)
        return (z - m) / jnp.sqrt(v + _BN_EPS)

    h = jnp.maximum(bn(h @ w0 + b0), 0.0)
    h = jnp.maximum(bn(h @ w1 + b1), 0.0)
    return jax.nn.sigmoid(h @ w2 + b2)


def forward_ref(x, voter_params, main_params, voters_count):
    B = x.shape[0]
    h = x.reshape(B * voters_count, 8)
    h = _mlp3_ref(h, voter_params)
    h = h.reshape(B, voters_count)
    return _mlp3_ref(h, main_params)


# ---------------- deterministic parameter init (PyTorch-style uniform) ----------------
def _init_linear(key, fan_in, fan_out):
    kw, kb = jax.random.split(key)
    bound = 1.0 / math.sqrt(fan_in)
    w = jax.random.uniform(kw, (fan_in, fan_out), jnp.float32, -bound, bound)
    b = jax.random.uniform(kb, (1, fan_out), jnp.float32, -bound, bound)
    return w, b


if __name__ == "__main__":
    # Small shapes consistent with the module: input_size must be a multiple of 8.
    B = 16
    input_size = 64
    output_size = 1
    voters_count = input_size // 8          # 8
    nn_width_voters, nn_depth_voters = 32, 2
    nn_width_main, nn_depth_main = 32, 2

    width_voters = [8] + [nn_width_voters] * nn_depth_voters + [output_size]   # [8,32,32,1]
    width_main = [voters_count] + [nn_width_main] * nn_depth_main + [1]        # [8,32,32,1]

    key = jax.random.PRNGKey(0)
    keys = jax.random.split(key, len(width_voters) - 1 + len(width_main) - 1 + 1)

    voter_params = [
        _init_linear(keys[i], width_voters[i], width_voters[i + 1])
        for i in range(len(width_voters) - 1)
    ]
    main_params = [
        _init_linear(keys[3 + i], width_main[i], width_main[i + 1])
        for i in range(len(width_main) - 1)
    ]

    # Binary "votes" input, shape (B, input_size).
    x = (jax.random.uniform(keys[-1], (B, input_size)) > 0.5).astype(jnp.float32)

    out = forward(x, voter_params, main_params, voters_count)
    out = jax.block_until_ready(out)
    assert out.shape == (B, 1), out.shape

    ref = forward_ref(x, voter_params, main_params, voters_count)
    np.testing.assert_allclose(np.asarray(out), np.asarray(ref), rtol=2e-3, atol=2e-3)

    print("KERNEL_OK")
</pallas_src>

<mosaic_0001>
module attributes {stable_mosaic.version = 11 : i64} {
  func.func @_fused_kernel(%arg0: memref<16x64xf32, #tpu.memory_space<vmem>>, %arg1: memref<352x256xf32, #tpu.memory_space<vmem>>, %arg2: memref<304x32xf32, #tpu.memory_space<vmem>>, %arg3: memref<256x8xf32, #tpu.memory_space<vmem>>, %arg4: memref<2x8xf32, #tpu.memory_space<vmem>>, %arg5: memref<16x1xf32, #tpu.memory_space<vmem>>) attributes {dimension_semantics = [], scalar_prefetch = 0 : i64, scratch_operands = 0 : i64, tpu.core_type = #tpu.core_type<tc>} {
    %c0 = arith.constant 0 : index
    %c0_0 = arith.constant 0 : index
    %0 = vector.load %arg1[%c0, %c0_0] : memref<352x256xf32, #tpu.memory_space<vmem>>, vector<64x256xf32>
    %c64 = arith.constant 64 : index
    %c0_1 = arith.constant 0 : index
    %1 = vector.load %arg1[%c64, %c0_1] : memref<352x256xf32, #tpu.memory_space<vmem>>, vector<256x256xf32>
    %c320 = arith.constant 320 : index
    %c0_2 = arith.constant 0 : index
    %2 = vector.load %arg1[%c320, %c0_2] : memref<352x256xf32, #tpu.memory_space<vmem>>, vector<32x256xf32>
    %c0_3 = arith.constant 0 : index
    %c0_4 = arith.constant 0 : index
    %3 = vector.load %arg2[%c0_3, %c0_4] : memref<304x32xf32, #tpu.memory_space<vmem>>, vector<256x32xf32>
    %c256 = arith.constant 256 : index
    %c0_5 = arith.constant 0 : index
    %4 = vector.load %arg2[%c256, %c0_5] : memref<304x32xf32, #tpu.memory_space<vmem>>, vector<8x32xf32>
    %c264 = arith.constant 264 : index
    %c0_6 = arith.constant 0 : index
    %5 = vector.load %arg2[%c264, %c0_6] : memref<304x32xf32, #tpu.memory_space<vmem>>, vector<32x32xf32>
    %c296 = arith.constant 296 : index
    %c0_7 = arith.constant 0 : index
    %6 = vector.load %arg2[%c296, %c0_7] : memref<304x32xf32, #tpu.memory_space<vmem>>, vector<1x32xf32>
    %c0_8 = arith.constant 0 : index
    %c0_9 = arith.constant 0 : index
    %7 = vector.load %arg4[%c0_8, %c0_9] : memref<2x8xf32, #tpu.memory_space<vmem>>, vector<1x8xf32>
    %c1 = arith.constant 1 : index
    %c0_10 = arith.constant 0 : index
    %8 = vector.load %arg4[%c1, %c0_10] : memref<2x8xf32, #tpu.memory_space<vmem>>, vector<1x1xf32>
    %c0_11 = arith.constant 0 : index
    %c0_12 = arith.constant 0 : index
    %9 = vector.load %arg0[%c0_11, %c0_12] : memref<16x64xf32, #tpu.memory_space<vmem>>, vector<16x64xf32>
    %cst = arith.constant dense<0.000000e+00> : vector<16x256xf32>
    %10 = tpu.matmul %9, %0, %cst {dimension_numbers = #tpu.dot_dimension_numbers<[1], [0], [0], [1], [0, 0, 1, 1], [], []>} : vector<16x64xf32>, vector<64x256xf32>, vector<16x256xf32> -> vector<16x256xf32>
    %cst_13 = arith.constant dense<0.000000e+00> : vector<256xf32>
    %11 = vector.multi_reduction <add>, %10, %cst_13 [0] : vector<16x256xf32> to vector<256xf32>
    %12 = vector.shape_cast %11 : vector<256xf32> to vector<1x256xf32>
    %13 = arith.mulf %10, %10 : vector<16x256xf32>
    %cst_14 = arith.constant dense<0.000000e+00> : vector<256xf32>
    %14 = vector.multi_reduction <add>, %13, %cst_14 [0] : vector<16x256xf32> to vector<256xf32>
    %15 = vector.shape_cast %14 : vector<256xf32> to vector<1x256xf32>
    %cst_15 = arith.constant dense<0.000000e+00> : vector<1x32xf32>
    %16 = tpu.matmul %12, %3, %cst_15 {dimension_numbers = #tpu.dot_dimension_numbers<[1], [0], [0], [1], [0, 0, 1, 1], [], []>} : vector<1x256xf32>, vector<256x32xf32>, vector<1x32xf32> -> vector<1x32xf32>
    %cst_16 = arith.constant 7.812500e-03 : f32
    %17 = vector.broadcast %cst_16 : f32 to vector<1x32xf32>
    %18 = arith.mulf %16, %17 : vector<1x32xf32>
    %cst_17 = arith.constant dense<0.000000e+00> : vector<1x32xf32>
    %19 = tpu.matmul %15, %3, %cst_17 {dimension_numbers = #tpu.dot_dimension_numbers<[1], [0], [0], [1], [0, 0, 1, 1], [], []>} : vector<1x256xf32>, vector<256x32xf32>, vector<1x32xf32> -> vector<1x32xf32>
    %cst_18 = arith.constant 7.812500e-03 : f32
    %20 = vector.broadcast %cst_18 : f32 to vector<1x32xf32>
    %21 = arith.mulf %19, %20 : vector<1x32xf32>
    %22 = arith.mulf %18, %18 : vector<1x32xf32>
    %23 = arith.subf %21, %22 : vector<1x32xf32>
    %cst_19 = arith.constant 9.99999974E-6 : f32
    %24 = vector.broadcast %cst_19 : f32 to vector<1x32xf32>
    %25 = arith.addf %23, %24 : vector<1x32xf32>
    %26 = math.rsqrt %25 : vector<1x32xf32>
    %cst_20 = arith.constant dense<0.000000e+00> : vector<1x256xf32>
    %27 = tpu.matmul %18, %2, %cst_20 {dimension_numbers = #tpu.dot_dimension_numbers<[1], [0], [0], [1], [0, 0, 1, 1], [], []>} : vector<1x32xf32>, vector<32x256xf32>, vector<1x256xf32> -> vector<1x256xf32>
    %cst_21 = arith.constant dense<0.000000e+00> : vector<1x256xf32>
    %28 = tpu.matmul %26, %2, %cst_21 {dimension_numbers = #tpu.dot_dimension_numbers<[1], [0], [0], [1], [0, 0, 1, 1], [], []>} : vector<1x32xf32>, vector<32x256xf32>, vector<1x256xf32> -> vector<1x256xf32>
    %29 = vector.broadcast %27 : vector<1x256xf32> to vector<16x256xf32>
    %30 = arith.subf %10, %29 : vector<16x256xf32>
    %31 = vector.broadcast %28 : vector<1x256xf32> to vector<16x256xf32>
    %32 = arith.mulf %30, %31 : vector<16x256xf32>
    %cst_22 = arith.constant 0.000000e+00 : f32
    %33 = vector.broadcast %cst_22 : f32 to vector<16x256xf32>
    %34 = arith.maximumf %32, %33 : vector<16x256xf32>
    %cst_23 = arith.constant dense<0.000000e+00> : vector<16x256xf32>
    %35 = tpu.matmul %34, %1, %cst_23 {dimension_numbers = #tpu.dot_dimension_numbers<[1], [0], [0], [1], [0, 0, 1, 1], [], []>} : vector<16x256xf32>, vector<256x256xf32>, vector<16x256xf32> -> vector<16x256xf32>
    %cst_24 = arith.constant dense<0.000000e+00> : vector<256xf32>
    %36 = vector.multi_reduction <add>, %35, %cst_24 [0] : vector<16x256xf32> to vector<256xf32>
    %37 = vector.shape_cast %36 : vector<256xf32> to vector<1x256xf32>
    %38 = arith.mulf %35, %35 : vector<16x256xf32>
    %cst_25 = arith.constant dense<0.000000e+00> : vector<256xf32>
    %39 = vector.multi_reduction <add>, %38, %cst_25 [0] : vector<16x256xf32> to vector<256xf32>
    %40 = vector.shape_cast %39 : vector<256xf32> to vector<1x256xf32>
    %cst_26 = arith.constant dense<0.000000e+00> : vector<1x32xf32>
    %41 = tpu.matmul %37, %3, %cst_26 {dimension_numbers = #tpu.dot_dimension_numbers<[1], [0], [0], [1], [0, 0, 1, 1], [], []>} : vector<1x256xf32>, vector<256x32xf32>, vector<1x32xf32> -> vector<1x32xf32>
    %cst_27 = arith.constant 7.812500e-03 : f32
    %42 = vector.broadcast %cst_27 : f32 to vector<1x32xf32>
    %43 = arith.mulf %41, %42 : vector<1x32xf32>
    %cst_28 = arith.constant dense<0.000000e+00> : vector<1x32xf32>
    %44 = tpu.matmul %40, %3, %cst_28 {dimension_numbers = #tpu.dot_dimension_numbers<[1], [0], [0], [1], [0, 0, 1, 1], [], []>} : vector<1x256xf32>, vector<256x32xf32>, vector<1x32xf32> -> vector<1x32xf32>
    %cst_29 = arith.constant 7.812500e-03 : f32
    %45 = vector.broadcast %cst_29 : f32 to vector<1x32xf32>
    %46 = arith.mulf %44, %45 : vector<1x32xf32>
    %47 = arith.mulf %43, %43 : vector<1x32xf32>
    %48 = arith.subf %46, %47 : vector<1x32xf32>
    %cst_30 = arith.constant 9.99999974E-6 : f32
    %49 = vector.broadcast %cst_30 : f32 to vector<1x32xf32>
    %50 = arith.addf %48, %49 : vector<1x32xf32>
    %51 = math.rsqrt %50 : vector<1x32xf32>
    %cst_31 = arith.constant dense<0.000000e+00> : vector<1x256xf32>
    %52 = tpu.matmul %43, %2, %cst_31 {dimension_numbers = #tpu.dot_dimension_numbers<[1], [0], [0], [1], [0, 0, 1, 1], [], []>} : vector<1x32xf32>, vector<32x256xf32>, vector<1x256xf32> -> vector<1x256xf32>
    %cst_32 = arith.constant dense<0.000000e+00> : vector<1x256xf32>
    %53 = tpu.matmul %51, %2, %cst_32 {dimension_numbers = #tpu.dot_dimension_numbers<[1], [0], [0], [1], [0, 0, 1, 1], [], []>} : vector<1x32xf32>, vector<32x256xf32>, vector<1x256xf32> -> vector<1x256xf32>
    %54 = vector.broadcast %52 : vector<1x256xf32> to vector<16x256xf32>
    %55 = arith.subf %35, %54 : vector<16x256xf32>
    %56 = vector.broadcast %53 : vector<1x256xf32> to vector<16x256xf32>
    %57 = arith.mulf %55, %56 : vector<16x256xf32>
    %cst_33 = arith.constant 0.000000e+00 : f32
    %58 = vector.broadcast %cst_33 : f32 to vector<16x256xf32>
    %59 = arith.maximumf %57, %58 : vector<16x256xf32>
    %c0_34 = arith.constant 0 : index
    %c0_35 = arith.constant 0 : index
    %60 = vector.load %arg3[%c0_34, %c0_35] : memref<256x8xf32, #tpu.memory_space<vmem>>, vector<256x8xf32>
    %cst_36 = arith.constant dense<0.000000e+00> : vector<16x8xf32>
    %61 = tpu.matmul %59, %60, %cst_36 {dimension_numbers = #tpu.dot_dimension_numbers<[1], [0], [0], [1], [0, 0, 1, 1], [], []>} : vector<16x256xf32>, vector<256x8xf32>, vector<16x8xf32> -> vector<16x8xf32>
    %62 = vector.broadcast %7 : vector<1x8xf32> to vector<16x8xf32>
    %63 = arith.addf %61, %62 : vector<16x8xf32>
    %64 = arith.negf %63 : vector<16x8xf32>
    %65 = math.exp %64 : vector<16x8xf32>
    %cst_37 = arith.constant 1.000000e+00 : f32
    %66 = vector.broadcast %cst_37 : f32 to vector<16x8xf32>
    %67 = arith.addf %66, %65 : vector<16x8xf32>
    %68 = arith.divf %66, %67 : vector<16x8xf32>
    %cst_38 = arith.constant dense<0.000000e+00> : vector<16x32xf32>
    %69 = tpu.matmul %68, %4, %cst_38 {dimension_numbers = #tpu.dot_dimension_numbers<[1], [0], [0], [1], [0, 0, 1, 1], [], []>} : vector<16x8xf32>, vector<8x32xf32>, vector<16x32xf32> -> vector<16x32xf32>
    %cst_39 = arith.constant dense<0.000000e+00> : vector<32xf32>
    %70 = vector.multi_reduction <add>, %69, %cst_39 [0] : vector<16x32xf32> to vector<32xf32>
    %71 = vector.shape_cast %70 : vector<32xf32> to vector<1x32xf32>
    %cst_40 = arith.constant 6.250000e-02 : f32
    %72 = vector.broadcast %cst_40 : f32 to vector<1x32xf32>
    %73 = arith.mulf %71, %72 : vector<1x32xf32>
    %74 = arith.mulf %69, %69 : vector<16x32xf32>
    %cst_41 = arith.constant dense<0.000000e+00> : vector<32xf32>
    %75 = vector.multi_reduction <add>, %74, %cst_41 [0] : vector<16x32xf32> to vector<32xf32>
    %76 = vector.shape_cast %75 : vector<32xf32> to vector<1x32xf32>
    %cst_42 = arith.constant 6.250000e-02 : f32
    %77 = vector.broadcast %cst_42 : f32 to vector<1x32xf32>
    %78 = arith.mulf %76, %77 : vector<1x32xf32>
    %79 = arith.mulf %73, %73 : vector<1x32xf32>
    %80 = arith.subf %78, %79 : vector<1x32xf32>
    %cst_43 = arith.constant 9.99999974E-6 : f32
    %81 = vector.broadcast %cst_43 : f32 to vector<1x32xf32>
    %82 = arith.addf %80, %81 : vector<1x32xf32>
    %83 = math.rsqrt %82 : vector<1x32xf32>
    %84 = vector.broadcast %73 : vector<1x32xf32> to vector<16x32xf32>
    %85 = arith.subf %69, %84 : vector<16x32xf32>
    %86 = vector.broadcast %83 : vector<1x32xf32> to vector<16x32xf32>
    %87 = arith.mulf %85, %86 : vector<16x32xf32>
    %cst_44 = arith.constant 0.000000e+00 : f32
    %88 = vector.broadcast %cst_44 : f32 to vector<16x32xf32>
    %89 = arith.maximumf %87, %88 : vector<16x32xf32>
    %cst_45 = arith.constant dense<0.000000e+00> : vector<16x32xf32>
    %90 = tpu.matmul %89, %5, %cst_45 {dimension_numbers = #tpu.dot_dimension_numbers<[1], [0], [0], [1], [0, 0, 1, 1], [], []>} : vector<16x32xf32>, vector<32x32xf32>, vector<16x32xf32> -> vector<16x32xf32>
    %cst_46 = arith.constant dense<0.000000e+00> : vector<32xf32>
    %91 = vector.multi_reduction <add>, %90, %cst_46 [0] : vector<16x32xf32> to vector<32xf32>
    %92 = vector.shape_cast %91 : vector<32xf32> to vector<1x32xf32>
    %cst_47 = arith.constant 6.250000e-02 : f32
    %93 = vector.broadcast %cst_47 : f32 to vector<1x32xf32>
    %94 = arith.mulf %92, %93 : vector<1x32xf32>
    %95 = arith.mulf %90, %90 : vector<16x32xf32>
    %cst_48 = arith.constant dense<0.000000e+00> : vector<32xf32>
    %96 = vector.multi_reduction <add>, %95, %cst_48 [0] : vector<16x32xf32> to vector<32xf32>
    %97 = vector.shape_cast %96 : vector<32xf32> to vector<1x32xf32>
    %cst_49 = arith.constant 6.250000e-02 : f32
    %98 = vector.broadcast %cst_49 : f32 to vector<1x32xf32>
    %99 = arith.mulf %97, %98 : vector<1x32xf32>
    %100 = arith.mulf %94, %94 : vector<1x32xf32>
    %101 = arith.subf %99, %100 : vector<1x32xf32>
    %cst_50 = arith.constant 9.99999974E-6 : f32
    %102 = vector.broadcast %cst_50 : f32 to vector<1x32xf32>
    %103 = arith.addf %101, %102 : vector<1x32xf32>
    %104 = math.rsqrt %103 : vector<1x32xf32>
    %105 = vector.broadcast %94 : vector<1x32xf32> to vector<16x32xf32>
    %106 = arith.subf %90, %105 : vector<16x32xf32>
    %107 = vector.broadcast %104 : vector<1x32xf32> to vector<16x32xf32>
    %108 = arith.mulf %106, %107 : vector<16x32xf32>
    %cst_51 = arith.constant 0.000000e+00 : f32
    %109 = vector.broadcast %cst_51 : f32 to vector<16x32xf32>
    %110 = arith.maximumf %108, %109 : vector<16x32xf32>
    %111 = vector.broadcast %6 : vector<1x32xf32> to vector<16x32xf32>
    %112 = arith.mulf %110, %111 : vector<16x32xf32>
    %cst_52 = arith.constant dense<0.000000e+00> : vector<16xf32>
    %113 = vector.multi_reduction <add>, %112, %cst_52 [1] : vector<16x32xf32> to vector<16xf32>
    %114 = vector.shape_cast %113 : vector<16xf32> to vector<16x1xf32>
    %115 = vector.broadcast %8 : vector<1x1xf32> to vector<16x1xf32>
    %116 = arith.addf %114, %115 : vector<16x1xf32>
    %117 = arith.negf %116 : vector<16x1xf32>
    %118 = math.exp %117 : vector<16x1xf32>
    %cst_53 = arith.constant 1.000000e+00 : f32
    %119 = vector.broadcast %cst_53 : f32 to vector<16x1xf32>
    %120 = arith.addf %119, %118 : vector<16x1xf32>
    %121 = arith.divf %119, %120 : vector<16x1xf32>
    %c0_54 = arith.constant 0 : index
    %c0_55 = arith.constant 0 : index
    %122 = vector.load %arg5[%c0_54, %c0_55] : memref<16x1xf32, #tpu.memory_space<vmem>>, vector<16x1xf32>
    tpu.vector_store %arg5[%c0_54, %c0_55], %121 {strides = array<i32>} : memref<16x1xf32, #tpu.memory_space<vmem>>, vector<16x1xf32>,
    return
  }
}

</mosaic_0001>

<llo_original>
// kernel: forward.1
$region0: #{forward.1}
  #allocation0 [shape = 'u32[]', space=smem, size = 0x4, offset = 0x4, fixed_abs, tag = 'smem constant byte address 0x4 - core index']
  #allocation1 [shape = 'u32[144,128]{1,0:T(1,128)}', space=vmem, size = 0x12000, scoped, tag = 'internal scratch']
  %s0 = inlined_call_operand.vmem [shape: f32[16,64], index: 0, kind: input, shape index: {}]
  %s1 = inlined_call_operand.vmem [shape: f32[352,256], index: 1, kind: input, shape index: {}]
  %s2 = inlined_call_operand.vmem [shape: f32[304,32], index: 2, kind: input, shape index: {}]
  %s3 = inlined_call_operand.vmem [shape: f32[256,8], index: 3, kind: input, shape index: {}]
  %s4 = inlined_call_operand.vmem [shape: f32[2,8], index: 4, kind: input, shape index: {}]
  %s5 = inlined_call_operand.vmem [shape: f32[16,1], index: 5, kind: output, shape index: {}]
  %s6 = sld [smem:[#allocation0]]
  $region30: #{forward.1} parent=0
    _
  %s8 = ssub.s32 1, %s6
  %s9 = scalar_select 0, %s8, %s6
  // Predicated region
  $region2: #{forward.1} parent=0 // pred_check
    _
  $region3: #{forward.1} parent=0 // pred_check_branch
    %11 = sbr.rel (0) target = $region5
  $region4: #{forward.1} parent=0 // pred_region
    _
  $region5: #{forward.1} parent=0 // pred_fallthru
    _
  // Predicated region
  $region6: #{forward.1} parent=0 // pred_check
    _
  $region7: #{forward.1} parent=0 // pred_check_branch
    %13 = sbr.rel (0) target = $region9
  $region8: #{forward.1} parent=0 // pred_region
    _
  $region9: #{forward.1} parent=0 // pred_fallthru
    _
  // Predicated region
  $region10: #{forward.1} parent=0 // pred_check
    _
  $region11: #{forward.1} parent=0 // pred_check_branch
    %15 = sbr.rel (0) target = $region13
  $region12: #{forward.1} parent=0 // pred_region
    _
  $region13: #{forward.1} parent=0 // pred_fallthru
    _
  // Predicated region
  $region14: #{forward.1} parent=0 // pred_check
    _
  $region15: #{forward.1} parent=0 // pred_check_branch
    %17 = sbr.rel (0) target = $region17
  $region16: #{forward.1} parent=0 // pred_region
    _
  $region17: #{forward.1} parent=0 // pred_fallthru
    _
  // Predicated region
  $region18: #{forward.1} parent=0 // pred_check
    _
  $region19: #{forward.1} parent=0 // pred_check_branch
    %19 = sbr.rel (0) target = $region21
  $region20: #{forward.1} parent=0 // pred_region
    _
  $region21: #{forward.1} parent=0 // pred_fallthru
    _
  %v20 = vld [vmem:[%s1] sm:$0xff]
  %v21 = vld [vmem:[%s1 + $0x8] sm:$0xff]
  %v22 = vld [vmem:[%s1 + $0x10] sm:$0xff]
  %v23 = vld [vmem:[%s1 + $0x18] sm:$0xff]
  %v24 = vld [vmem:[%s1 + $0x20] sm:$0xff]
  %v25 = vld [vmem:[%s1 + $0x28] sm:$0xff]
  %v26 = vld [vmem:[%s1 + $0x30] sm:$0xff]
  %v27 = vld [vmem:[%s1 + $0x38] sm:$0xff]
  %v28 = vld [vmem:[%s1 + $0x40] sm:$0xff]
  %v29 = vld [vmem:[%s1 + $0x48] sm:$0xff]
  %v30 = vld [vmem:[%s1 + $0x50] sm:$0xff]
  %v31 = vld [vmem:[%s1 + $0x58] sm:$0xff]
  %v32 = vld [vmem:[%s1 + $0x60] sm:$0xff]
  %v33 = vld [vmem:[%s1 + $0x68] sm:$0xff]
  %v34 = vld [vmem:[%s1 + $0x70] sm:$0xff]
  %v35 = vld [vmem:[%s1 + $0x78] sm:$0xff]
  %v36 = vld [vmem:[%s1 + $0x80] sm:$0xff]
  %v37 = vld [vmem:[%s1 + $0x88] sm:$0xff]
  %v38 = vld [vmem:[%s1 + $0x90] sm:$0xff]
  %v39 = vld [vmem:[%s1 + $0x98] sm:$0xff]
  %v40 = vld [vmem:[%s1 + $0xa0] sm:$0xff]
  %v41 = vld [vmem:[%s1 + $0xa8] sm:$0xff]
  %v42 = vld [vmem:[%s1 + $0xb0] sm:$0xff]
  %v43 = vld [vmem:[%s1 + $0xb8] sm:$0xff]
  %v44 = vld [vmem:[%s1 + $0xc0] sm:$0xff]
  %v45 = vld [vmem:[%s1 + $0xc8] sm:$0xff]
  %v46 = vld [vmem:[%s1 + $0xd0] sm:$0xff]
  %v47 = vld [vmem:[%s1 + $0xd8] sm:$0xff]
  %v48 = vld [vmem:[%s1 + $0xe0] sm:$0xff]
  %v49 = vld [vmem:[%s1 + $0xe8] sm:$0xff]
  %v50 = vld [vmem:[%s1 + $0xf0] sm:$0xff]
  %v51 = vld [vmem:[%s1 + $0xf8] sm:$0xff]
  %v52 = vld [vmem:[%s1 + $0x100] sm:$0xff]
  %v53 = vld [vmem:[%s1 + $0x108] sm:$0xff]
  %v54 = vld [vmem:[%s1 + $0x110] sm:$0xff]
  %v55 = vld [vmem:[%s1 + $0x118] sm:$0xff]
  %v56 = vld [vmem:[%s1 + $0x120] sm:$0xff]
  %v57 = vld [vmem:[%s1 + $0x128] sm:$0xff]
  %v58 = vld [vmem:[%s1 + $0x130] sm:$0xff]
  %v59 = vld [vmem:[%s1 + $0x138] sm:$0xff]
  %v60 = vld [vmem:[%s1 + $0x140] sm:$0xff]
  %v61 = vld [vmem:[%s1 + $0x148] sm:$0xff]
  %v62 = vld [vmem:[%s1 + $0x150] sm:$0xff]
  %v63 = vld [vmem:[%s1 + $0x158] sm:$0xff]
  %v64 = vld [vmem:[%s1 + $0x160] sm:$0xff]
  %v65 = vld [vmem:[%s1 + $0x168] sm:$0xff]
  %v66 = vld [vmem:[%s1 + $0x170] sm:$0xff]
  %v67 = vld [vmem:[%s1 + $0x178] sm:$0xff]
  %v68 = vld [vmem:[%s1 + $0x180] sm:$0xff]
  %v69 = vld [vmem:[%s1 + $0x188] sm:$0xff]
  %v70 = vld [vmem:[%s1 + $0x190] sm:$0xff]
  %v71 = vld [vmem:[%s1 + $0x198] sm:$0xff]
  %v72 = vld [vmem:[%s1 + $0x1a0] sm:$0xff]
  %v73 = vld [vmem:[%s1 + $0x1a8] sm:$0xff]
  %v74 = vld [vmem:[%s1 + $0x1b0] sm:$0xff]
  %v75 = vld [vmem:[%s1 + $0x1b8] sm:$0xff]
  %v76 = vld [vmem:[%s1 + $0x1c0] sm:$0xff]
  %v77 = vld [vmem:[%s1 + $0x1c8] sm:$0xff]
  %v78 = vld [vmem:[%s1 + $0x1d0] sm:$0xff]
  %v79 = vld [vmem:[%s1 + $0x1d8] sm:$0xff]
  %v80 = vld [vmem:[%s1 + $0x1e0] sm:$0xff]
  %v81 = vld [vmem:[%s1 + $0x1e8] sm:$0xff]
  %v82 = vld [vmem:[%s1 + $0x1f0] sm:$0xff]
  %v83 = vld [vmem:[%s1 + $0x1f8] sm:$0xff]
  %v84 = vld [vmem:[%s1 + $0x200] sm:$0xff]
  %v85 = vld [vmem:[%s1 + $0x208] sm:$0xff]
  %v86 = vld [vmem:[%s1 + $0x210] sm:$0xff]
  %v87 = vld [vmem:[%s1 + $0x218] sm:$0xff]
  %v88 = vld [vmem:[%s1 + $0x220] sm:$0xff]
  %v89 = vld [vmem:[%s1 + $0x228] sm:$0xff]
  %v90 = vld [vmem:[%s1 + $0x230] sm:$0xff]
  %v91 = vld [vmem:[%s1 + $0x238] sm:$0xff]
  %v92 = vld [vmem:[%s1 + $0x240] sm:$0xff]
  %v93 = vld [vmem:[%s1 + $0x248] sm:$0xff]
  %v94 = vld [vmem:[%s1 + $0x250] sm:$0xff]
  %v95 = vld [vmem:[%s1 + $0x258] sm:$0xff]
  %v96 = vld [vmem:[%s1 + $0x260] sm:$0xff]
  %v97 = vld [vmem:[%s1 + $0x268] sm:$0xff]
  %v98 = vld [vmem:[%s1 + $0x270] sm:$0xff]
  %v99 = vld [vmem:[%s1 + $0x278] sm:$0xff]
  %v100 = vld [vmem:[%s1 + $0x280] sm:$0xff]
  %v101 = vld [vmem:[%s1 + $0x288] sm:$0xff]
  %v102 = vld [vmem:[%s1 + $0x290] sm:$0xff]
  %v103 = vld [vmem:[%s1 + $0x298] sm:$0xff]
  %v104 = vld [vmem:[%s1 + $0x2a0] sm:$0xff]
  %v105 = vld [vmem:[%s1 + $0x2a8] sm:$0xff]
  %v106 = vld [vmem:[%s1 + $0x2b0] sm:$0xff]
  %v107 = vld [vmem:[%s1 + $0x2b8] sm:$0xff]
  %v108 = vld [vmem:[%s2] sm:$0xff]
  %v109 = vld [vmem:[%s2 + $0x8] sm:$0xff]
  %v110 = vld [vmem:[%s2 + $0x10] sm:$0xff]
  %v111 = vld [vmem:[%s2 + $0x18] sm:$0xff]
  %v112 = vld [vmem:[%s2 + $0x20] sm:$0xff]
  %v113 = vld [vmem:[%s2 + $0x28] sm:$0xff]
  %v114 = vld [vmem:[%s2 + $0x30] sm:$0xff]
  %v115 = vld [vmem:[%s2 + $0x38] sm:$0xff]
  %v116 = vld [vmem:[%s2 + $0x40] sm:$0xff]
  %v117 = vld [vmem:[%s2 + $0x48] sm:$0xff]
  %v118 = vld [vmem:[%s2 + $0x50] sm:$0xff]
  %v119 = vld [vmem:[%s2 + $0x58] sm:$0xff]
  %v120 = vld [vmem:[%s2 + $0x60] sm:$0xff]
  %v121 = vld [vmem:[%s2 + $0x68] sm:$0xff]
  %v122 = vld [vmem:[%s2 + $0x70] sm:$0xff]
  %v123 = vld [vmem:[%s2 + $0x78] sm:$0xff]
  %v124 = vld [vmem:[%s2 + $0x80] sm:$0xff]
  %v125 = vld [vmem:[%s2 + $0x88] sm:$0xff]
  %v126 = vld [vmem:[%s2 + $0x90] sm:$0xff]
  %v127 = vld [vmem:[%s2 + $0x98] sm:$0xff]
  %v128 = vld [vmem:[%s2 + $0xa0] sm:$0xff]
  %v129 = vld [vmem:[%s2 + $0xa8] sm:$0xff]
  %v130 = vld [vmem:[%s2 + $0xb0] sm:$0xff]
  %v131 = vld [vmem:[%s2 + $0xb8] sm:$0xff]
  %v132 = vld [vmem:[%s2 + $0xc0] sm:$0xff]
  %v133 = vld [vmem:[%s2 + $0xc8] sm:$0xff]
  %v134 = vld [vmem:[%s2 + $0xd0] sm:$0xff]
  %v135 = vld [vmem:[%s2 + $0xd8] sm:$0xff]
  %v136 = vld [vmem:[%s2 + $0xe0] sm:$0xff]
  %v137 = vld [vmem:[%s2 + $0xe8] sm:$0xff]
  %v138 = vld [vmem:[%s2 + $0xf0] sm:$0xff]
  %v139 = vld [vmem:[%s2 + $0xf8] sm:$0xff]
  %v140 = vld [vmem:[%s2 + $0x100] sm:$0xff]
  %v141 = vld [vmem:[%s2 + $0x108] sm:$0xff]
  %v142 = vld [vmem:[%s2 + $0x110] sm:$0xff]
  %v143 = vld [vmem:[%s2 + $0x118] sm:$0xff]
  %v144 = vld [vmem:[%s2 + $0x120] sm:$0xff]
  %v145 = vld [vmem:[%s2 + $0x128] sm:$0x1]
  %v146 = vld [vmem:[%s4] sm:$0x1]
  %v147 = vld [vmem:[%s4 + $0x1] sm:$0x1]
  %v148 = vld [vmem:[%s0] sm:$0xff]
  %v149 = vld [vmem:[%s0 + $0x8] sm:$0xff]
  %vm150 = vcmask 523264
  %v152 = vsel %vm150, %v148, 0
  %v155 = vsel %vm150, %v149, 0
  %157 = vmatprep.subr.mxu0 %v21
  %158 = vmatpush1.msra.mxu0 %v20
  %159 = vmatprep.subr.mxu0 %v23
  %160 = vmatpush1.msra.mxu0 %v22
  %161 = vmatprep.subr.mxu0 %v25
  %162 = vmatpush1.msra.mxu0 %v24
  %163 = vmatprep.subr.mxu0 %v27
  %164 = vmatpush1.msra.mxu0 %v26
  %165 = vmatprep.subr.mxu0 %v29
  %166 = vmatpush1.msra.mxu0 %v28
  %167 = vmatprep.subr.mxu0 %v31
  %168 = vmatpush1.msra.mxu0 %v30
  %169 = vmatprep.subr.mxu0 %v33
  %170 = vmatpush1.msra.mxu0 %v32
  %171 = vmatprep.subr.mxu0 %v35
  %172 = vmatpush1.msra.mxu0 %v34
  %173 = vmatprep.subr.mxu0 0.0
  %174 = vmatpush1.msra.mxu0 0.0
  %175 = vmatprep.subr.mxu0 0.0
  %176 = vmatpush1.msra.mxu0 0.0
  %177 = vmatprep.subr.mxu0 0.0
  %178 = vmatpush1.msra.mxu0 0.0
  %179 = vmatprep.subr.mxu0 0.0
  %180 = vmatpush1.msra.mxu0 0.0
  %181 = vmatprep.subr.mxu0 0.0
  %182 = vmatpush1.msra.mxu0 0.0
  %183 = vmatprep.subr.mxu0 0.0
  %184 = vmatpush1.msra.mxu0 0.0
  %185 = vmatprep.subr.mxu0 0.0
  %186 = vmatpush1.msra.mxu0 0.0
  %187 = vmatprep.subr.mxu0 0.0
  %188 = vmatpush1.msra.mxu0 0.0
  %189 = vmatprep.subr.mxu0 0.0
  %190 = vmatpush1.msra.mxu0 0.0
  %191 = vmatprep.subr.mxu0 0.0
  %192 = vmatpush1.msra.mxu0 0.0
  %193 = vmatprep.subr.mxu0 0.0
  %194 = vmatpush1.msra.mxu0 0.0
  %195 = vmatprep.subr.mxu0 0.0
  %196 = vmatpush1.msra.mxu0 0.0
  %197 = vmatprep.subr.mxu0 0.0
  %198 = vmatpush1.msra.mxu0 0.0
  %199 = vmatprep.subr.mxu0 0.0
  %200 = vmatpush1.msra.mxu0 0.0
  %201 = vmatprep.subr.mxu0 0.0
  %202 = vmatpush1.msra.mxu0 0.0
  %203 = vmatprep.subr.mxu0 0.0
  %204 = vmatpush1.msra.mxu0 0.0
  %205 = vmatprep.subr.mxu0 0.0
  %206 = vmatpush1.msra.mxu0 0.0
  %207 = vmatprep.subr.mxu0 0.0
  %208 = vmatpush1.msra.mxu0 0.0
  %209 = vmatprep.subr.mxu0 0.0
  %210 = vmatpush1.msra.mxu0 0.0
  %211 = vmatprep.subr.mxu0 0.0
  %212 = vmatpush1.msra.mxu0 0.0
  %213 = vmatprep.subr.mxu0 0.0
  %214 = vmatpush1.msra.mxu0 0.0
  %215 = vmatprep.subr.mxu0 0.0
  %216 = vmatpush1.msra.mxu0 0.0
  %217 = vmatprep.subr.mxu0 0.0
  %218 = vmatpush1.msra.mxu0 0.0
  %219 = vmatprep.subr.mxu0 0.0
  %220 = vmatpush1.msra.mxu0 0.0
  %221 = vmatprep.mubr.f32.mxu0 0.0
  %222 = vmatmul.mubr.f32.gmra.mrb[0].mxu0 %v152
  %v223 = vpop.f32.mrb[0].mxu0
  %v224 = vadd.f32 0.0, %v223
  %v225 = vpop.f32.mrb[0].mxu0
  %v226 = vadd.f32 0.0, %v225
  %227 = vmatprep.mubr.f32.mxu0 0.0
  %228 = vmatmul.mubr.f32.gmra.mrb[0].mxu0 %v155
  %v229 = vpop.f32.mrb[0].mxu0
  %v230 = vadd.f32 0.0, %v229
  %v231 = vpop.f32.mrb[0].mxu0
  %v232 = vadd.f32 0.0, %v231
  %233 = vdwg.mxu0
  %v234 = vadd.f32 %v224, %v230
  %v235 = vrot.slane %v234, 4
  %v236 = vadd.f32 %v234, %v235
  %v237 = vrot.slane %v236, 2
  %v238 = vadd.f32 %v236, %v237
  %v239 = vrot.slane %v238, 1
  %v240 = vadd.f32 %v238, %v239
  %v241 = vadd.f32 %v226, %v232
  %v242 = vrot.slane %v241, 4
  %v243 = vadd.f32 %v241, %v242
  %v244 = vrot.slane %v243, 2
  %v245 = vadd.f32 %v243, %v244
  %v246 = vrot.slane %v245, 1
  %v247 = vadd.f32 %v245, %v246
  %v248 = vmul.f32 %v224, %v224
  %v249 = vmul.f32 %v226, %v226
  %v250 = vmul.f32 %v230, %v230
  %v251 = vmul.f32 %v232, %v232
  %v252 = vadd.f32 %v248, %v250
  %v253 = vrot.slane %v252, 4
  %v254 = vadd.f32 %v252, %v253
  %v255 = vrot.slane %v254, 2
  %v256 = vadd.f32 %v254, %v255
  %v257 = vrot.slane %v256, 1
  %v258 = vadd.f32 %v256, %v257
  %v259 = vadd.f32 %v249, %v251
  %v260 = vrot.slane %v259, 4
  %v261 = vadd.f32 %v259, %v260
  %v262 = vrot.slane %v261, 2
  %v263 = vadd.f32 %v261, %v262
  %v264 = vrot.slane %v263, 1
  %v265 = vadd.f32 %v263, %v264
  %266 = vmatprep.subr.mxu0 0.0
  %267 = vmatpush1.msra.mxu0 %v108
  %268 = vmatprep.subr.mxu0 0.0
  %269 = vmatpush1.msra.mxu0 %v109
  %270 = vmatprep.subr.mxu0 0.0
  %271 = vmatpush1.msra.mxu0 %v110
  %272 = vmatprep.subr.mxu0 0.0
  %273 = vmatpush1.msra.mxu0 %v111
  %274 = vmatprep.subr.mxu0 0.0
  %275 = vmatpush1.msra.mxu0 %v112
  %276 = vmatprep.subr.mxu0 0.0
  %277 = vmatpush1.msra.mxu0 %v113
  %278 = vmatprep.subr.mxu0 0.0
  %279 = vmatpush1.msra.mxu0 %v114
  %280 = vmatprep.subr.mxu0 0.0
  %281 = vmatpush1.msra.mxu0 %v115
  %282 = vmatprep.subr.mxu0 0.0
  %283 = vmatpush1.msra.mxu0 %v116
  %284 = vmatprep.subr.mxu0 0.0
  %285 = vmatpush1.msra.mxu0 %v117
  %286 = vmatprep.subr.mxu0 0.0
  %287 = vmatpush1.msra.mxu0 %v118
  %288 = vmatprep.subr.mxu0 0.0
  %289 = vmatpush1.msra.mxu0 %v119
  %290 = vmatprep.subr.mxu0 0.0
  %291 = vmatpush1.msra.mxu0 %v120
  %292 = vmatprep.subr.mxu0 0.0
  %293 = vmatpush1.msra.mxu0 %v121
  %294 = vmatprep.subr.mxu0 0.0
  %295 = vmatpush1.msra.mxu0 %v122
  %296 = vmatprep.subr.mxu0 0.0
  %297 = vmatpush1.msra.mxu0 %v123
  %298 = vmatprep.subr.mxu0 0.0
  %299 = vmatpush1.msra.mxu0 %v124
  %300 = vmatprep.subr.mxu0 0.0
  %301 = vmatpush1.msra.mxu0 %v125
  %302 = vmatprep.subr.mxu0 0.0
  %303 = vmatpush1.msra.mxu0 %v126
  %304 = vmatprep.subr.mxu0 0.0
  %305 = vmatpush1.msra.mxu0 %v127
  %306 = vmatprep.subr.mxu0 0.0
  %307 = vmatpush1.msra.mxu0 %v128
  %308 = vmatprep.subr.mxu0 0.0
  %309 = vmatpush1.msra.mxu0 %v129
  %310 = vmatprep.subr.mxu0 0.0
  %311 = vmatpush1.msra.mxu0 %v130
  %312 = vmatprep.subr.mxu0 0.0
  %313 = vmatpush1.msra.mxu0 %v131
  %314 = vmatprep.subr.mxu0 0.0
  %315 = vmatpush1.msra.mxu0 %v132
  %316 = vmatprep.subr.mxu0 0.0
  %317 = vmatpush1.msra.mxu0 %v133
  %318 = vmatprep.subr.mxu0 0.0
  %319 = vmatpush1.msra.mxu0 %v134
  %320 = vmatprep.subr.mxu0 0.0
  %321 = vmatpush1.msra.mxu0 %v135
  %322 = vmatprep.subr.mxu0 0.0
  %323 = vmatpush1.msra.mxu0 %v136
  %324 = vmatprep.subr.mxu0 0.0
  %325 = vmatpush1.msra.mxu0 %v137
  %326 = vmatprep.subr.mxu0 0.0
  %327 = vmatpush1.msra.mxu0 %v138
  %328 = vmatprep.subr.mxu0 0.0
  %329 = vmatpush1.msra.mxu0 %v139
  %330 = vmatprep.mubr.f32.mxu0 %v247
  %331 = vmatmul.mubr.f32.gmra.mrb[0].mxu0 %v240
  %v332 = vpop.f32.mrb[0].mxu0
  %v333 = vadd.f32 0.0, %v332
  %v334 = vpop.f32.mrb[0].mxu0
  %335 = vdwg.mxu0
  %v336 = vmul.f32 %v333, 0.0078125
  %337 = vmatprep.subr.mxu0 0.0
  %338 = vmatpush1.msra.mxu0 %v108
  %339 = vmatprep.subr.mxu0 0.0
  %340 = vmatpush1.msra.mxu0 %v109
  %341 = vmatprep.subr.mxu0 0.0
  %342 = vmatpush1.msra.mxu0 %v110
  %343 = vmatprep.subr.mxu0 0.0
  %344 = vmatpush1.msra.mxu0 %v111
  %345 = vmatprep.subr.mxu0 0.0
  %346 = vmatpush1.msra.mxu0 %v112
  %347 = vmatprep.subr.mxu0 0.0
  %348 = vmatpush1.msra.mxu0 %v113
  %349 = vmatprep.subr.mxu0 0.0
  %350 = vmatpush1.msra.mxu0 %v114
  %351 = vmatprep.subr.mxu0 0.0
  %352 = vmatpush1.msra.mxu0 %v115
  %353 = vmatprep.subr.mxu0 0.0
  %354 = vmatpush1.msra.mxu0 %v116
  %355 = vmatprep.subr.mxu0 0.0
  %356 = vmatpush1.msra.mxu0 %v117
  %357 = vmatprep.subr.mxu0 0.0
  %358 = vmatpush1.msra.mxu0 %v118
  %359 = vmatprep.subr.mxu0 0.0
  %360 = vmatpush1.msra.mxu0 %v119
  %361 = vmatprep.subr.mxu0 0.0
  %362 = vmatpush1.msra.mxu0 %v120
  %363 = vmatprep.subr.mxu0 0.0
  %364 = vmatpush1.msra.mxu0 %v121
  %365 = vmatprep.subr.mxu0 0.0
  %366 = vmatpush1.msra.mxu0 %v122
  %367 = vmatprep.subr.mxu0 0.0
  %368 = vmatpush1.msra.mxu0 %v123
  %369 = vmatprep.subr.mxu0 0.0
  %370 = vmatpush1.msra.mxu0 %v124
  %371 = vmatprep.subr.mxu0 0.0
  %372 = vmatpush1.msra.mxu0 %v125
  %373 = vmatprep.subr.mxu0 0.0
  %374 = vmatpush1.msra.mxu0 %v126
  %375 = vmatprep.subr.mxu0 0.0
  %376 = vmatpush1.msra.mxu0 %v127
  %377 = vmatprep.subr.mxu0 0.0
  %378 = vmatpush1.msra.mxu0 %v128
  %379 = vmatprep.subr.mxu0 0.0
  %380 = vmatpush1.msra.mxu0 %v129
  %381 = vmatprep.subr.mxu0 0.0
  %382 = vmatpush1.msra.mxu0 %v130
  %383 = vmatprep.subr.mxu0 0.0
  %384 = vmatpush1.msra.mxu0 %v131
  %385 = vmatprep.subr.mxu0 0.0
  %386 = vmatpush1.msra.mxu0 %v132
  %387 = vmatprep.subr.mxu0 0.0
  %388 = vmatpush1.msra.mxu0 %v133
  %389 = vmatprep.subr.mxu0 0.0
  %390 = vmatpush1.msra.mxu0 %v134
  %391 = vmatprep.subr.mxu0 0.0
  %392 = vmatpush1.msra.mxu0 %v135
  %393 = vmatprep.subr.mxu0 0.0
  %394 = vmatpush1.msra.mxu0 %v136
  %395 = vmatprep.subr.mxu0 0.0
  %396 = vmatpush1.msra.mxu0 %v137
  %397 = vmatprep.subr.mxu0 0.0
  %398 = vmatpush1.msra.mxu0 %v138
  %399 = vmatprep.subr.mxu0 0.0
  %400 = vmatpush1.msra.mxu0 %v139
  %401 = vmatprep.mubr.f32.mxu0 %v265
  %402 = vmatmul.mubr.f32.gmra.mrb[0].mxu0 %v258
  %v403 = vpop.f32.mrb[0].mxu0
  %v404 = vadd.f32 0.0, %v403
  %v405 = vpop.f32.mrb[0].mxu0
  %406 = vdwg.mxu0
  %v407 = vmul.f32 %v404, 0.0078125
  %v408 = vmul.f32 %v336, %v336
  %v409 = vsub.f32 %v407, %v408
  %v410 = vadd.f32 %v409, 1e-05
  %v411 = vrsqrt.pop %v410
  %vm412 = vcmask 261120
  %v414 = vsel %vm412, %v336, 0
  %416 = vmatprep.subr.mxu0 %v101
  %417 = vmatpush1.msra.mxu0 %v100
  %418 = vmatprep.subr.mxu0 %v103
  %419 = vmatpush1.msra.mxu0 %v102
  %420 = vmatprep.subr.mxu0 %v105
  %421 = vmatpush1.msra.mxu0 %v104
  %422 = vmatprep.subr.mxu0 %v107
  %423 = vmatpush1.msra.mxu0 %v106
  %424 = vmatprep.subr.mxu0 0.0
  %425 = vmatpush1.msra.mxu0 0.0
  %426 = vmatprep.subr.mxu0 0.0
  %427 = vmatpush1.msra.mxu0 0.0
  %428 = vmatprep.subr.mxu0 0.0
  %429 = vmatpush1.msra.mxu0 0.0
  %430 = vmatprep.subr.mxu0 0.0
  %431 = vmatpush1.msra.mxu0 0.0
  %432 = vmatprep.subr.mxu0 0.0
  %433 = vmatpush1.msra.mxu0 0.0
  %434 = vmatprep.subr.mxu0 0.0
  %435 = vmatpush1.msra.mxu0 0.0
  %436 = vmatprep.subr.mxu0 0.0
  %437 = vmatpush1.msra.mxu0 0.0
  %438 = vmatprep.subr.mxu0 0.0
  %439 = vmatpush1.msra.mxu0 0.0
  %440 = vmatprep.subr.mxu0 0.0
  %441 = vmatpush1.msra.mxu0 0.0
  %442 = vmatprep.subr.mxu0 0.0
  %443 = vmatpush1.msra.mxu0 0.0
  %444 = vmatprep.subr.mxu0 0.0
  %445 = vmatpush1.msra.mxu0 0.0
  %446 = vmatprep.subr.mxu0 0.0
  %447 = vmatpush1.msra.mxu0 0.0
  %448 = vmatprep.subr.mxu0 0.0
  %449 = vmatpush1.msra.mxu0 0.0
  %450 = vmatprep.subr.mxu0 0.0
  %451 = vmatpush1.msra.mxu0 0.0
  %452 = vmatprep.subr.mxu0 0.0
  %453 = vmatpush1.msra.mxu0 0.0
  %454 = vmatprep.subr.mxu0 0.0
  %455 = vmatpush1.msra.mxu0 0.0
  %456 = vmatprep.subr.mxu0 0.0
  %457 = vmatpush1.msra.mxu0 0.0
  %458 = vmatprep.subr.mxu0 0.0
  %459 = vmatpush1.msra.mxu0 0.0
  %460 = vmatprep.subr.mxu0 0.0
  %461 = vmatpush1.msra.mxu0 0.0
  %462 = vmatprep.subr.mxu0 0.0
  %463 = vmatpush1.msra.mxu0 0.0
  %464 = vmatprep.subr.mxu0 0.0
  %465 = vmatpush1.msra.mxu0 0.0
  %466 = vmatprep.subr.mxu0 0.0
  %467 = vmatpush1.msra.mxu0 0.0
  %468 = vmatprep.subr.mxu0 0.0
  %469 = vmatpush1.msra.mxu0 0.0
  %470 = vmatprep.subr.mxu0 0.0
  %471 = vmatpush1.msra.mxu0 0.0
  %472 = vmatprep.subr.mxu0 0.0
  %473 = vmatpush1.msra.mxu0 0.0
  %474 = vmatprep.subr.mxu0 0.0
  %475 = vmatpush1.msra.mxu0 0.0
  %476 = vmatprep.subr.mxu0 0.0
  %477 = vmatpush1.msra.mxu0 0.0
  %478 = vmatprep.subr.mxu0 0.0
  %479 = vmatpush1.msra.mxu0 0.0
  %480 = vmatprep.mubr.f32.mxu0 0.0
  %481 = vmatmul.mubr.f32.gmra.mrb[0].mxu0 %v414
  %v482 = vpop.f32.mrb[0].mxu0
  %v483 = vadd.f32 0.0, %v482
  %v484 = vpop.f32.mrb[0].mxu0
  %v485 = vadd.f32 0.0, %v484
  %486 = vdwg.mxu0
  %v488 = vsel %vm412, %v411, 0
  %490 = vmatprep.subr.mxu0 %v101
  %491 = vmatpush1.msra.mxu0 %v100
  %492 = vmatprep.subr.mxu0 %v103
  %493 = vmatpush1.msra.mxu0 %v102
  %494 = vmatprep.subr.mxu0 %v105
  %495 = vmatpush1.msra.mxu0 %v104
  %496 = vmatprep.subr.mxu0 %v107
  %497 = vmatpush1.msra.mxu0 %v106
  %498 = vmatprep.subr.mxu0 0.0
  %499 = vmatpush1.msra.mxu0 0.0
  %500 = vmatprep.subr.mxu0 0.0
  %501 = vmatpush1.msra.mxu0 0.0
  %502 = vmatprep.subr.mxu0 0.0
  %503 = vmatpush1.msra.mxu0 0.0
  %504 = vmatprep.subr.mxu0 0.0
  %505 = vmatpush1.msra.mxu0 0.0
  %506 = vmatprep.subr.mxu0 0.0
  %507 = vmatpush1.msra.mxu0 0.0
  %508 = vmatprep.subr.mxu0 0.0
  %509 = vmatpush1.msra.mxu0 0.0
  %510 = vmatprep.subr.mxu0 0.0
  %511 = vmatpush1.msra.mxu0 0.0
  %512 = vmatprep.subr.mxu0 0.0
  %513 = vmatpush1.msra.mxu0 0.0
  %514 = vmatprep.subr.mxu0 0.0
  %515 = vmatpush1.msra.mxu0 0.0
  %516 = vmatprep.subr.mxu0 0.0
  %517 = vmatpush1.msra.mxu0 0.0
  %518 = vmatprep.subr.mxu0 0.0
  %519 = vmatpush1.msra.mxu0 0.0
  %520 = vmatprep.subr.mxu0 0.0
  %521 = vmatpush1.msra.mxu0 0.0
  %522 = vmatprep.subr.mxu0 0.0
  %523 = vmatpush1.msra.mxu0 0.0
  %524 = vmatprep.subr.mxu0 0.0
  %525 = vmatpush1.msra.mxu0 0.0
  %526 = vmatprep.subr.mxu0 0.0
  %527 = vmatpush1.msra.mxu0 0.0
  %528 = vmatprep.subr.mxu0 0.0
  %529 = vmatpush1.msra.mxu0 0.0
  %530 = vmatprep.subr.mxu0 0.0
  %531 = vmatpush1.msra.mxu0 0.0
  %532 = vmatprep.subr.mxu0 0.0
  %533 = vmatpush1.msra.mxu0 0.0
  %534 = vmatprep.subr.mxu0 0.0
  %535 = vmatpush1.msra.mxu0 0.0
  %536 = vmatprep.subr.mxu0 0.0
  %537 = vmatpush1.msra.mxu0 0.0
  %538 = vmatprep.subr.mxu0 0.0
  %539 = vmatpush1.msra.mxu0 0.0
  %540 = vmatprep.subr.mxu0 0.0
  %541 = vmatpush1.msra.mxu0 0.0
  %542 = vmatprep.subr.mxu0 0.0
  %543 = vmatpush1.msra.mxu0 0.0
  %544 = vmatprep.subr.mxu0 0.0
  %545 = vmatpush1.msra.mxu0 0.0
  %546 = vmatprep.subr.mxu0 0.0
  %547 = vmatpush1.msra.mxu0 0.0
  %548 = vmatprep.subr.mxu0 0.0
  %549 = vmatpush1.msra.mxu0 0.0
  %550 = vmatprep.subr.mxu0 0.0
  %551 = vmatpush1.msra.mxu0 0.0
  %552 = vmatprep.subr.mxu0 0.0
  %553 = vmatpush1.msra.mxu0 0.0
  %554 = vmatprep.mubr.f32.mxu0 0.0
  %555 = vmatmul.mubr.f32.gmra.mrb[0].mxu0 %v488
  %v556 = vpop.f32.mrb[0].mxu0
  %v557 = vadd.f32 0.0, %v556
  %v558 = vpop.f32.mrb[0].mxu0
  %v559 = vadd.f32 0.0, %v558
  %560 = vdwg.mxu0
  %v561 = vlaneseq
  %v562 = vshrl.u32 %v561, 7
  %v563 = vsub.s32 0, %v562
  %v564 = vrot.slane %v483, %v563
  %v565 = vlaneseq
  %v566 = vshrl.u32 %v565, 7
  %v567 = vsub.s32 0, %v566
  %v568 = vrot.slane %v485, %v567
  %v569 = vsub.f32 %v224, %v564
  %v570 = vsub.f32 %v226, %v568
  %v571 = vsub.f32 %v230, %v564
  %v572 = vsub.f32 %v232, %v568
  %v573 = vlaneseq
  %v574 = vshrl.u32 %v573, 7
  %v575 = vsub.s32 0, %v574
  %v576 = vrot.slane %v557, %v575
  %v577 = vlaneseq
  %v578 = vshrl.u32 %v577, 7
  %v579 = vsub.s32 0, %v578
  %v580 = vrot.slane %v559, %v579
  %v581 = vmul.f32 %v569, %v576
  %v582 = vmul.f32 %v570, %v580
  %v583 = vmul.f32 %v571, %v576
  %v584 = vmul.f32 %v572, %v580
  %v585 = vmax.f32 %v581, 0.0
  %v586 = vmax.f32 %v582, 0.0
  %v587 = vmax.f32 %v583, 0.0
  %v588 = vmax.f32 %v584, 0.0
  %589 = vmatprep.subr.mxu0 %v37
  %590 = vmatpush1.msra.mxu0 %v36
  %591 = vmatprep.subr.mxu0 %v39
  %592 = vmatpush1.msra.mxu0 %v38
  %593 = vmatprep.subr.mxu0 %v41
  %594 = vmatpush1.msra.mxu0 %v40
  %595 = vmatprep.subr.mxu0 %v43
  %596 = vmatpush1.msra.mxu0 %v42
  %597 = vmatprep.subr.mxu0 %v45
  %598 = vmatpush1.msra.mxu0 %v44
  %599 = vmatprep.subr.mxu0 %v47
  %600 = vmatpush1.msra.mxu0 %v46
  %601 = vmatprep.subr.mxu0 %v49
  %602 = vmatpush1.msra.mxu0 %v48
  %603 = vmatprep.subr.mxu0 %v51
  %604 = vmatpush1.msra.mxu0 %v50
  %605 = vmatprep.subr.mxu0 %v53
  %606 = vmatpush1.msra.mxu0 %v52
  %607 = vmatprep.subr.mxu0 %v55
  %608 = vmatpush1.msra.mxu0 %v54
  %609 = vmatprep.subr.mxu0 %v57
  %610 = vmatpush1.msra.mxu0 %v56
  %611 = vmatprep.subr.mxu0 %v59
  %612 = vmatpush1.msra.mxu0 %v58
  %613 = vmatprep.subr.mxu0 %v61
  %614 = vmatpush1.msra.mxu0 %v60
  %615 = vmatprep.subr.mxu0 %v63
  %616 = vmatpush1.msra.mxu0 %v62
  %617 = vmatprep.subr.mxu0 %v65
  %618 = vmatpush1.msra.mxu0 %v64
  %619 = vmatprep.subr.mxu0 %v67
  %620 = vmatpush1.msra.mxu0 %v66
  %621 = vmatprep.subr.mxu0 %v69
  %622 = vmatpush1.msra.mxu0 %v68
  %623 = vmatprep.subr.mxu0 %v71
  %624 = vmatpush1.msra.mxu0 %v70
  %625 = vmatprep.subr.mxu0 %v73
  %626 = vmatpush1.msra.mxu0 %v72
  %627 = vmatprep.subr.mxu0 %v75
  %628 = vmatpush1.msra.mxu0 %v74
  %629 = vmatprep.subr.mxu0 %v77
  %630 = vmatpush1.msra.mxu0 %v76
  %631 = vmatprep.subr.mxu0 %v79
  %632 = vmatpush1.msra.mxu0 %v78
  %633 = vmatprep.subr.mxu0 %v81
  %634 = vmatpush1.msra.mxu0 %v80
  %635 = vmatprep.subr.mxu0 %v83
  %636 = vmatpush1.msra.mxu0 %v82
  %637 = vmatprep.subr.mxu0 %v85
  %638 = vmatpush1.msra.mxu0 %v84
  %639 = vmatprep.subr.mxu0 %v87
  %640 = vmatpush1.msra.mxu0 %v86
  %641 = vmatprep.subr.mxu0 %v89
  %642 = vmatpush1.msra.mxu0 %v88
  %643 = vmatprep.subr.mxu0 %v91
  %644 = vmatpush1.msra.mxu0 %v90
  %645 = vmatprep.subr.mxu0 %v93
  %646 = vmatpush1.msra.mxu0 %v92
  %647 = vmatprep.subr.mxu0 %v95
  %648 = vmatpush1.msra.mxu0 %v94
  %649 = vmatprep.subr.mxu0 %v97
  %650 = vmatpush1.msra.mxu0 %v96
  %651 = vmatprep.subr.mxu0 %v99
  %652 = vmatpush1.msra.mxu0 %v98
  %653 = vmatprep.mubr.f32.mxu0 %v586
  %654 = vmatmul.mubr.f32.gmra.mrb[0].mxu0 %v585
  %v655 = vpop.f32.mrb[0].mxu0
  %v656 = vadd.f32 0.0, %v655
  %v657 = vpop.f32.mrb[0].mxu0
  %v658 = vadd.f32 0.0, %v657
  %659 = vmatprep.mubr.f32.mxu0 %v588
  %660 = vmatmul.mubr.f32.gmra.mrb[0].mxu0 %v587
  %v661 = vpop.f32.mrb[0].mxu0
  %v662 = vadd.f32 0.0, %v661
  %v663 = vpop.f32.mrb[0].mxu0
  %v664 = vadd.f32 0.0, %v663
  %665 = vdwg.mxu0
  %v666 = vadd.f32 %v656, %v662
  %v667 = vrot.slane %v666, 4
  %v668 = vadd.f32 %v666, %v667
  %v669 = vrot.slane %v668, 2
  %v670 = vadd.f32 %v668, %v669
  %v671 = vrot.slane %v670, 1
  %v672 = vadd.f32 %v670, %v671
  %v673 = vadd.f32 %v658, %v664
  %v674 = vrot.slane %v673, 4
  %v675 = vadd.f32 %v673, %v674
  %v676 = vrot.slane %v675, 2
  %v677 = vadd.f32 %v675, %v676
  %v678 = vrot.slane %v677, 1
  %v679 = vadd.f32 %v677, %v678
  %v680 = vmul.f32 %v656, %v656
  %v681 = vmul.f32 %v658, %v658
  %v682 = vmul.f32 %v662, %v662
  %v683 = vmul.f32 %v664, %v664
  %v684 = vadd.f32 %v680, %v682
  %v685 = vrot.slane %v684, 4
  %v686 = vadd.f32 %v684, %v685
  %v687 = vrot.slane %v686, 2
  %v688 = vadd.f32 %v686, %v687
  %v689 = vrot.slane %v688, 1
  %v690 = vadd.f32 %v688, %v689
  %v691 = vadd.f32 %v681, %v683
  %v692 = vrot.slane %v691, 4
  %v693 = vadd.f32 %v691, %v692
  %v694 = vrot.slane %v693, 2
  %v695 = vadd.f32 %v693, %v694
  %v696 = vrot.slane %v695, 1
  %v697 = vadd.f32 %v695, %v696
  %698 = vmatprep.subr.mxu0 0.0
  %699 = vmatpush1.msra.mxu0 %v108
  %700 = vmatprep.subr.mxu0 0.0
  %701 = vmatpush1.msra.mxu0 %v109
  %702 = vmatprep.subr.mxu0 0.0
  %703 = vmatpush1.msra.mxu0 %v110
  %704 = vmatprep.subr.mxu0 0.0
  %705 = vmatpush1.msra.mxu0 %v111
  %706 = vmatprep.subr.mxu0 0.0
  %707 = vmatpush1.msra.mxu0 %v112
  %708 = vmatprep.subr.mxu0 0.0
  %709 = vmatpush1.msra.mxu0 %v113
  %710 = vmatprep.subr.mxu0 0.0
  %711 = vmatpush1.msra.mxu0 %v114
  %712 = vmatprep.subr.mxu0 0.0
  %713 = vmatpush1.msra.mxu0 %v115
  %714 = vmatprep.subr.mxu0 0.0
  %715 = vmatpush1.msra.mxu0 %v116
  %716 = vmatprep.subr.mxu0 0.0
  %717 = vmatpush1.msra.mxu0 %v117
  %718 = vmatprep.subr.mxu0 0.0
  %719 = vmatpush1.msra.mxu0 %v118
  %720 = vmatprep.subr.mxu0 0.0
  %721 = vmatpush1.msra.mxu0 %v119
  %722 = vmatprep.subr.mxu0 0.0
  %723 = vmatpush1.msra.mxu0 %v120
  %724 = vmatprep.subr.mxu0 0.0
  %725 = vmatpush1.msra.mxu0 %v121
  %726 = vmatprep.subr.mxu0 0.0
  %727 = vmatpush1.msra.mxu0 %v122
  %728 = vmatprep.subr.mxu0 0.0
  %729 = vmatpush1.msra.mxu0 %v123
  %730 = vmatprep.subr.mxu0 0.0
  %731 = vmatpush1.msra.mxu0 %v124
  %732 = vmatprep.subr.mxu0 0.0
  %733 = vmatpush1.msra.mxu0 %v125
  %734 = vmatprep.subr.mxu0 0.0
  %735 = vmatpush1.msra.mxu0 %v126
  %736 = vmatprep.subr.mxu0 0.0
  %737 = vmatpush1.msra.mxu0 %v127
  %738 = vmatprep.subr.mxu0 0.0
  %739 = vmatpush1.msra.mxu0 %v128
  %740 = vmatprep.subr.mxu0 0.0
  %741 = vmatpush1.msra.mxu0 %v129
  %742 = vmatprep.subr.mxu0 0.0
  %743 = vmatpush1.msra.mxu0 %v130
  %744 = vmatprep.subr.mxu0 0.0
  %745 = vmatpush1.msra.mxu0 %v131
  %746 = vmatprep.subr.mxu0 0.0
  %747 = vmatpush1.msra.mxu0 %v132
  %748 = vmatprep.subr.mxu0 0.0
  %749 = vmatpush1.msra.mxu0 %v133
  %750 = vmatprep.subr.mxu0 0.0
  %751 = vmatpush1.msra.mxu0 %v134
  %752 = vmatprep.subr.mxu0 0.0
  %753 = vmatpush1.msra.mxu0 %v135
  %754 = vmatprep.subr.mxu0 0.0
  %755 = vmatpush1.msra.mxu0 %v136
  %756 = vmatprep.subr.mxu0 0.0
  %757 = vmatpush1.msra.mxu0 %v137
  %758 = vmatprep.subr.mxu0 0.0
  %759 = vmatpush1.msra.mxu0 %v138
  %760 = vmatprep.subr.mxu0 0.0
  %761 = vmatpush1.msra.mxu0 %v139
  %762 = vmatprep.mubr.f32.mxu0 %v679
  %763 = vmatmul.mubr.f32.gmra.mrb[0].mxu0 %v672
  %v764 = vpop.f32.mrb[0].mxu0
  %v765 = vadd.f32 0.0, %v764
  %v766 = vpop.f32.mrb[0].mxu0
  %767 = vdwg.mxu0
  %v768 = vmul.f32 %v765, 0.0078125
  %769 = vmatprep.subr.mxu0 0.0
  %770 = vmatpush1.msra.mxu0 %v108
  %771 = vmatprep.subr.mxu0 0.0
  %772 = vmatpush1.msra.mxu0 %v109
  %773 = vmatprep.subr.mxu0 0.0
  %774 = vmatpush1.msra.mxu0 %v110
  %775 = vmatprep.subr.mxu0 0.0
  %776 = vmatpush1.msra.mxu0 %v111
  %777 = vmatprep.subr.mxu0 0.0
  %778 = vmatpush1.msra.mxu0 %v112
  %779 = vmatprep.subr.mxu0 0.0
  %780 = vmatpush1.msra.mxu0 %v113
  %781 = vmatprep.subr.mxu0 0.0
  %782 = vmatpush1.msra.mxu0 %v114
  %783 = vmatprep.subr.mxu0 0.0
  %784 = vmatpush1.msra.mxu0 %v115
  %785 = vmatprep.subr.mxu0 0.0
  %786 = vmatpush1.msra.mxu0 %v116
  %787 = vmatprep.subr.mxu0 0.0
  %788 = vmatpush1.msra.mxu0 %v117
  %789 = vmatprep.subr.mxu0 0.0
  %790 = vmatpush1.msra.mxu0 %v118
  %791 = vmatprep.subr.mxu0 0.0
  %792 = vmatpush1.msra.mxu0 %v119
  %793 = vmatprep.subr.mxu0 0.0
  %794 = vmatpush1.msra.mxu0 %v120
  %795 = vmatprep.subr.mxu0 0.0
  %796 = vmatpush1.msra.mxu0 %v121
  %797 = vmatprep.subr.mxu0 0.0
  %798 = vmatpush1.msra.mxu0 %v122
  %799 = vmatprep.subr.mxu0 0.0
  %800 = vmatpush1.msra.mxu0 %v123
  %801 = vmatprep.subr.mxu0 0.0
  %802 = vmatpush1.msra.mxu0 %v124
  %803 = vmatprep.subr.mxu0 0.0
  %804 = vmatpush1.msra.mxu0 %v125
  %805 = vmatprep.subr.mxu0 0.0
  %806 = vmatpush1.msra.mxu0 %v126
  %807 = vmatprep.subr.mxu0 0.0
  %808 = vmatpush1.msra.mxu0 %v127
  %809 = vmatprep.subr.mxu0 0.0
  %810 = vmatpush1.msra.mxu0 %v128
  %811 = vmatprep.subr.mxu0 0.0
  %812 = vmatpush1.msra.mxu0 %v129
  %813 = vmatprep.subr.mxu0 0.0
  %814 = vmatpush1.msra.mxu0 %v130
  %815 = vmatprep.subr.mxu0 0.0
  %816 = vmatpush1.msra.mxu0 %v131
  %817 = vmatprep.subr.mxu0 0.0
  %818 = vmatpush1.msra.mxu0 %v132
  %819 = vmatprep.subr.mxu0 0.0
  %820 = vmatpush1.msra.mxu0 %v133
  %821 = vmatprep.subr.mxu0 0.0
  %822 = vmatpush1.msra.mxu0 %v134
  %823 = vmatprep.subr.mxu0 0.0
  %824 = vmatpush1.msra.mxu0 %v135
  %825 = vmatprep.subr.mxu0 0.0
  %826 = vmatpush1.msra.mxu0 %v136
  %827 = vmatprep.subr.mxu0 0.0
  %828 = vmatpush1.msra.mxu0 %v137
  %829 = vmatprep.subr.mxu0 0.0
  %830 = vmatpush1.msra.mxu0 %v138
  %831 = vmatprep.subr.mxu0 0.0
  %832 = vmatpush1.msra.mxu0 %v139
  %833 = vmatprep.mubr.f32.mxu0 %v697
  %834 = vmatmul.mubr.f32.gmra.mrb[0].mxu0 %v690
  %v835 = vpop.f32.mrb[0].mxu0
  %v836 = vadd.f32 0.0, %v835
  %v837 = vpop.f32.mrb[0].mxu0
  %838 = vdwg.mxu0
  %v839 = vmul.f32 %v836, 0.0078125
  %v840 = vmul.f32 %v768, %v768
  %v841 = vsub.f32 %v839, %v840
  %v842 = vadd.f32 %v841, 1e-05
  %v843 = vrsqrt.pop %v842
  %v845 = vsel %vm412, %v768, 0
  %847 = vmatprep.subr.mxu0 %v101
  %848 = vmatpush1.msra.mxu0 %v100
  %849 = vmatprep.subr.mxu0 %v103
  %850 = vmatpush1.msra.mxu0 %v102
  %851 = vmatprep.subr.mxu0 %v105
  %852 = vmatpush1.msra.mxu0 %v104
  %853 = vmatprep.subr.mxu0 %v107
  %854 = vmatpush1.msra.mxu0 %v106
  %855 = vmatprep.subr.mxu0 0.0
  %856 = vmatpush1.msra.mxu0 0.0
  %857 = vmatprep.subr.mxu0 0.0
  %858 = vmatpush1.msra.mxu0 0.0
  %859 = vmatprep.subr.mxu0 0.0
  %860 = vmatpush1.msra.mxu0 0.0
  %861 = vmatprep.subr.mxu0 0.0
  %862 = vmatpush1.msra.mxu0 0.0
  %863 = vmatprep.subr.mxu0 0.0
  %864 = vmatpush1.msra.mxu0 0.0
  %865 = vmatprep.subr.mxu0 0.0
  %866 = vmatpush1.msra.mxu0 0.0
  %867 = vmatprep.subr.mxu0 0.0
  %868 = vmatpush1.msra.mxu0 0.0
  %869 = vmatprep.subr.mxu0 0.0
  %870 = vmatpush1.msra.mxu0 0.0
  %871 = vmatprep.subr.mxu0 0.0
  %872 = vmatpush1.msra.mxu0 0.0
  %873 = vmatprep.subr.mxu0 0.0
  %874 = vmatpush1.msra.mxu0 0.0
  %875 = vmatprep.subr.mxu0 0.0
  %876 = vmatpush1.msra.mxu0 0.0
  %877 = vmatprep.subr.mxu0 0.0
  %878 = vmatpush1.msra.mxu0 0.0
  %879 = vmatprep.subr.mxu0 0.0
  %880 = vmatpush1.msra.mxu0 0.0
  %881 = vmatprep.subr.mxu0 0.0
  %882 = vmatpush1.msra.mxu0 0.0
  %883 = vmatprep.subr.mxu0 0.0
  %884 = vmatpush1.msra.mxu0 0.0
  %885 = vmatprep.subr.mxu0 0.0
  %886 = vmatpush1.msra.mxu0 0.0
  %887 = vmatprep.subr.mxu0 0.0
  %888 = vmatpush1.msra.mxu0 0.0
  %889 = vmatprep.subr.mxu0 0.0
  %890 = vmatpush1.msra.mxu0 0.0
  %891 = vmatprep.subr.mxu0 0.0
  %892 = vmatpush1.msra.mxu0 0.0
  %893 = vmatprep.subr.mxu0 0.0
  %894 = vmatpush1.msra.mxu0 0.0
  %895 = vmatprep.subr.mxu0 0.0
  %896 = vmatpush1.msra.mxu0 0.0
  %897 = vmatprep.subr.mxu0 0.0
  %898 = vmatpush1.msra.mxu0 0.0
  %899 = vmatprep.subr.mxu0 0.0
  %900 = vmatpush1.msra.mxu0 0.0
  %901 = vmatprep.subr.mxu0 0.0
  %902 = vmatpush1.msra.mxu0 0.0
  %903 = vmatprep.subr.mxu0 0.0
  %904 = vmatpush1.msra.mxu0 0.0
  %905 = vmatprep.subr.mxu0 0.0
  %906 = vmatpush1.msra.mxu0 0.0
  %907 = vmatprep.subr.mxu0 0.0
  %908 = vmatpush1.msra.mxu0 0.0
  %909 = vmatprep.subr.mxu0 0.0
  %910 = vmatpush1.msra.mxu0 0.0
  %911 = vmatprep.mubr.f32.mxu0 0.0
  %912 = vmatmul.mubr.f32.gmra.mrb[0].mxu0 %v845
  %v913 = vpop.f32.mrb[0].mxu0
  %v914 = vadd.f32 0.0, %v913
  %v915 = vpop.f32.mrb[0].mxu0
  %v916 = vadd.f32 0.0, %v915
  %917 = vdwg.mxu0
  %v919 = vsel %vm412, %v843, 0
  %921 = vmatprep.subr.mxu0 %v101
  %922 = vmatpush1.msra.mxu0 %v100
  %923 = vmatprep.subr.mxu0 %v103
  %924 = vmatpush1.msra.mxu0 %v102
  %925 = vmatprep.subr.mxu0 %v105
  %926 = vmatpush1.msra.mxu0 %v104
  %927 = vmatprep.subr.mxu0 %v107
  %928 = vmatpush1.msra.mxu0 %v106
  %929 = vmatprep.subr.mxu0 0.0
  %930 = vmatpush1.msra.mxu0 0.0
  %931 = vmatprep.subr.mxu0 0.0
  %932 = vmatpush1.msra.mxu0 0.0
  %933 = vmatprep.subr.mxu0 0.0
  %934 = vmatpush1.msra.mxu0 0.0
  %935 = vmatprep.subr.mxu0 0.0
  %936 = vmatpush1.msra.mxu0 0.0
  %937 = vmatprep.subr.mxu0 0.0
  %938 = vmatpush1.msra.mxu0 0.0
  %939 = vmatprep.subr.mxu0 0.0
  %940 = vmatpush1.msra.mxu0 0.0
  %941 = vmatprep.subr.mxu0 0.0
  %942 = vmatpush1.msra.mxu0 0.0
  %943 = vmatprep.subr.mxu0 0.0
  %944 = vmatpush1.msra.mxu0 0.0
  %945 = vmatprep.subr.mxu0 0.0
  %946 = vmatpush1.msra.mxu0 0.0
  %947 = vmatprep.subr.mxu0 0.0
  %948 = vmatpush1.msra.mxu0 0.0
  %949 = vmatprep.subr.mxu0 0.0
  %950 = vmatpush1.msra.mxu0 0.0
  %951 = vmatprep.subr.mxu0 0.0
  %952 = vmatpush1.msra.mxu0 0.0
  %953 = vmatprep.subr.mxu0 0.0
  %954 = vmatpush1.msra.mxu0 0.0
  %955 = vmatprep.subr.mxu0 0.0
  %956 = vmatpush1.msra.mxu0 0.0
  %957 = vmatprep.subr.mxu0 0.0
  %958 = vmatpush1.msra.mxu0 0.0
  %959 = vmatprep.subr.mxu0 0.0
  %960 = vmatpush1.msra.mxu0 0.0
  %961 = vmatprep.subr.mxu0 0.0
  %962 = vmatpush1.msra.mxu0 0.0
  %963 = vmatprep.subr.mxu0 0.0
  %964 = vmatpush1.msra.mxu0 0.0
  %965 = vmatprep.subr.mxu0 0.0
  %966 = vmatpush1.msra.mxu0 0.0
  %967 = vmatprep.subr.mxu0 0.0
  %968 = vmatpush1.msra.mxu0 0.0
  %969 = vmatprep.subr.mxu0 0.0
  %970 = vmatpush1.msra.mxu0 0.0
  %971 = vmatprep.subr.mxu0 0.0
  %972 = vmatpush1.msra.mxu0 0.0
  %973 = vmatprep.subr.mxu0 0.0
  %974 = vmatpush1.msra.mxu0 0.0
  %975 = vmatprep.subr.mxu0 0.0
  %976 = vmatpush1.msra.mxu0 0.0
  %977 = vmatprep.subr.mxu0 0.0
  %978 = vmatpush1.msra.mxu0 0.0
  %979 = vmatprep.subr.mxu0 0.0
  %980 = vmatpush1.msra.mxu0 0.0
  %981 = vmatprep.subr.mxu0 0.0
  %982 = vmatpush1.msra.mxu0 0.0
  %983 = vmatprep.subr.mxu0 0.0
  %984 = vmatpush1.msra.mxu0 0.0
  %985 = vmatprep.mubr.f32.mxu0 0.0
  %986 = vmatmul.mubr.f32.gmra.mrb[0].mxu0 %v919
  %v987 = vpop.f32.mrb[0].mxu0
  %v988 = vadd.f32 0.0, %v987
  %v989 = vpop.f32.mrb[0].mxu0
  %v990 = vadd.f32 0.0, %v989
  %991 = vdwg.mxu0
  %v992 = vlaneseq
  %v993 = vshrl.u32 %v992, 7
  %v994 = vsub.s32 0, %v993
  %v995 = vrot.slane %v914, %v994
  %v996 = vlaneseq
  %v997 = vshrl.u32 %v996, 7
  %v998 = vsub.s32 0, %v997
  %v999 = vrot.slane %v916, %v998
  %v1000 = vsub.f32 %v656, %v995
  %v1001 = vsub.f32 %v658, %v999
  %v1002 = vsub.f32 %v662, %v995
  %v1003 = vsub.f32 %v664, %v999
  %v1004 = vlaneseq
  %v1005 = vshrl.u32 %v1004, 7
  %v1006 = vsub.s32 0, %v1005
  %v1007 = vrot.slane %v988, %v1006
  %v1008 = vlaneseq
  %v1009 = vshrl.u32 %v1008, 7
  %v1010 = vsub.s32 0, %v1009
  %v1011 = vrot.slane %v990, %v1010
  %v1012 = vmul.f32 %v1000, %v1007
  %v1013 = vmul.f32 %v1001, %v1011
  %v1014 = vmul.f32 %v1002, %v1007
  %v1015 = vmul.f32 %v1003, %v1011
  %v1016 = vmax.f32 %v1012, 0.0
  %v1017 = vmax.f32 %v1013, 0.0
  %v1018 = vmax.f32 %v1014, 0.0
  %v1019 = vmax.f32 %v1015, 0.0
  %v1020 = vld [vmem:[%s3] sm:$0xff]
  %v1021 = vld [vmem:[%s3 + $0x8] sm:$0xff]
  %v1022 = vld [vmem:[%s3 + $0x10] sm:$0xff]
  %v1023 = vld [vmem:[%s3 + $0x18] sm:$0xff]
  %v1024 = vld [vmem:[%s3 + $0x20] sm:$0xff]
  %v1025 = vld [vmem:[%s3 + $0x28] sm:$0xff]
  %v1026 = vld [vmem:[%s3 + $0x30] sm:$0xff]
  %v1027 = vld [vmem:[%s3 + $0x38] sm:$0xff]
  %v1028 = vld [vmem:[%s3 + $0x40] sm:$0xff]
  %v1029 = vld [vmem:[%s3 + $0x48] sm:$0xff]
  %v1030 = vld [vmem:[%s3 + $0x50] sm:$0xff]
  %v1031 = vld [vmem:[%s3 + $0x58] sm:$0xff]
  %v1032 = vld [vmem:[%s3 + $0x60] sm:$0xff]
  %v1033 = vld [vmem:[%s3 + $0x68] sm:$0xff]
  %v1034 = vld [vmem:[%s3 + $0x70] sm:$0xff]
  %v1035 = vld [vmem:[%s3 + $0x78] sm:$0xff]
  %v1036 = vld [vmem:[%s3 + $0x80] sm:$0xff]
  %v1037 = vld [vmem:[%s3 + $0x88] sm:$0xff]
  %v1038 = vld [vmem:[%s3 + $0x90] sm:$0xff]
  %v1039 = vld [vmem:[%s3 + $0x98] sm:$0xff]
  %v1040 = vld [vmem:[%s3 + $0xa0] sm:$0xff]
  %v1041 = vld [vmem:[%s3 + $0xa8] sm:$0xff]
  %v1042 = vld [vmem:[%s3 + $0xb0] sm:$0xff]
  %v1043 = vld [vmem:[%s3 + $0xb8] sm:$0xff]
  %v1044 = vld [vmem:[%s3 + $0xc0] sm:$0xff]
  %v1045 = vld [vmem:[%s3 + $0xc8] sm:$0xff]
  %v1046 = vld [vmem:[%s3 + $0xd0] sm:$0xff]
  %v1047 = vld [vmem:[%s3 + $0xd8] sm:$0xff]
  %v1048 = vld [vmem:[%s3 + $0xe0] sm:$0xff]
  %v1049 = vld [vmem:[%s3 + $0xe8] sm:$0xff]
  %v1050 = vld [vmem:[%s3 + $0xf0] sm:$0xff]
  %v1051 = vld [vmem:[%s3 + $0xf8] sm:$0xff]
  %v1052 = vlaneseq
  %v1053 = vshrl.u32 %v1052, 7
  %v1054 = vsub.s32 0, %v1053
  %v1055 = vrot.slane %v146, %v1054
  %1056 = vmatprep.subr.mxu0 0.0
  %1057 = vmatpush1.msra.mxu0 %v1020
  %1058 = vmatprep.subr.mxu0 0.0
  %1059 = vmatpush1.msra.mxu0 %v1021
  %1060 = vmatprep.subr.mxu0 0.0
  %1061 = vmatpush1.msra.mxu0 %v1022
  %1062 = vmatprep.subr.mxu0 0.0
  %1063 = vmatpush1.msra.mxu0 %v1023
  %1064 = vmatprep.subr.mxu0 0.0
  %1065 = vmatpush1.msra.mxu0 %v1024
  %1066 = vmatprep.subr.mxu0 0.0
  %1067 = vmatpush1.msra.mxu0 %v1025
  %1068 = vmatprep.subr.mxu0 0.0
  %1069 = vmatpush1.msra.mxu0 %v1026
  %1070 = vmatprep.subr.mxu0 0.0
  %1071 = vmatpush1.msra.mxu0 %v1027
  %1072 = vmatprep.subr.mxu0 0.0
  %1073 = vmatpush1.msra.mxu0 %v1028
  %1074 = vmatprep.subr.mxu0 0.0
  %1075 = vmatpush1.msra.mxu0 %v1029
  %1076 = vmatprep.subr.mxu0 0.0
  %1077 = vmatpush1.msra.mxu0 %v1030
  %1078 = vmatprep.subr.mxu0 0.0
  %1079 = vmatpush1.msra.mxu0 %v1031
  %1080 = vmatprep.subr.mxu0 0.0
  %1081 = vmatpush1.msra.mxu0 %v1032
  %1082 = vmatprep.subr.mxu0 0.0
  %1083 = vmatpush1.msra.mxu0 %v1033
  %1084 = vmatprep.subr.mxu0 0.0
  %1085 = vmatpush1.msra.mxu0 %v1034
  %1086 = vmatprep.subr.mxu0 0.0
  %1087 = vmatpush1.msra.mxu0 %v1035
  %1088 = vmatprep.subr.mxu0 0.0
  %1089 = vmatpush1.msra.mxu0 %v1036
  %1090 = vmatprep.subr.mxu0 0.0
  %1091 = vmatpush1.msra.mxu0 %v1037
  %1092 = vmatprep.subr.mxu0 0.0
  %1093 = vmatpush1.msra.mxu0 %v1038
  %1094 = vmatprep.subr.mxu0 0.0
  %1095 = vmatpush1.msra.mxu0 %v1039
  %1096 = vmatprep.subr.mxu0 0.0
  %1097 = vmatpush1.msra.mxu0 %v1040
  %1098 = vmatprep.subr.mxu0 0.0
  %1099 = vmatpush1.msra.mxu0 %v1041
  %1100 = vmatprep.subr.mxu0 0.0
  %1101 = vmatpush1.msra.mxu0 %v1042
  %1102 = vmatprep.subr.mxu0 0.0
  %1103 = vmatpush1.msra.mxu0 %v1043
  %1104 = vmatprep.subr.mxu0 0.0
  %1105 = vmatpush1.msra.mxu0 %v1044
  %1106 = vmatprep.subr.mxu0 0.0
  %1107 = vmatpush1.msra.mxu0 %v1045
  %1108 = vmatprep.subr.mxu0 0.0
  %1109 = vmatpush1.msra.mxu0 %v1046
  %1110 = vmatprep.subr.mxu0 0.0
  %1111 = vmatpush1.msra.mxu0 %v1047
  %1112 = vmatprep.subr.mxu0 0.0
  %1113 = vmatpush1.msra.mxu0 %v1048
  %1114 = vmatprep.subr.mxu0 0.0
  %1115 = vmatpush1.msra.mxu0 %v1049
  %1116 = vmatprep.subr.mxu0 0.0
  %1117 = vmatpush1.msra.mxu0 %v1050
  %1118 = vmatprep.subr.mxu0 0.0
  %1119 = vmatpush1.msra.mxu0 %v1051
  %1120 = vmatprep.mubr.f32.mxu0 %v1017
  %1121 = vmatmul.mubr.f32.gmra.mrb[0].mxu0 %v1016
  %v1122 = vpop.f32.mrb[0].mxu0
  %v1123 = vadd.f32 %v1055, %v1122
  %v1124 = vpop.f32.mrb[0].mxu0
  %1125 = vmatprep.mubr.f32.mxu0 %v1019
  %1126 = vmatmul.mubr.f32.gmra.mrb[0].mxu0 %v1018
  %v1127 = vpop.f32.mrb[0].mxu0
  %v1128 = vadd.f32 %v1055, %v1127
  %v1129 = vpop.f32.mrb[0].mxu0
  %1130 = vdwg.mxu0
  %v1131 = vxor.u32 %v1123, 2147483648
  %v1132 = vxor.u32 %v1128, 2147483648
  %v1133 = vmul.f32 %v1131, 1.442695
  %v1134 = vpow.pop %v1133
  %v1135 = vmul.f32 %v1132, 1.442695
  %v1136 = vpow.pop %v1135
  %v1137 = vadd.f32 %v1134, 1.0
  %v1138 = vadd.f32 %v1136, 1.0
  %v1139 = vrcp.pop %v1137
  %v1140 = vmul.f32 1.0, %v1139
  %v1141 = vrcp.pop %v1138
  %v1142 = vmul.f32 1.0, %v1141
  %vm1143 = vcmask 64512
  %v1145 = vsel %vm1143, %v1140, 0
  %v1148 = vsel %vm1143, %v1142, 0
  %1150 = vmatprep.subr.mxu0 0.0
  %1151 = vmatpush1.msra.mxu0 %v140
  %1152 = vmatprep.subr.mxu0 0.0
  %1153 = vmatpush1.msra.mxu0 0.0
  %1154 = vmatprep.subr.mxu0 0.0
  %1155 = vmatpush1.msra.mxu0 0.0
  %1156 = vmatprep.subr.mxu0 0.0
  %1157 = vmatpush1.msra.mxu0 0.0
  %1158 = vmatprep.subr.mxu0 0.0
  %1159 = vmatpush1.msra.mxu0 0.0
  %1160 = vmatprep.subr.mxu0 0.0
  %1161 = vmatpush1.msra.mxu0 0.0
  %1162 = vmatprep.subr.mxu0 0.0
  %1163 = vmatpush1.msra.mxu0 0.0
  %1164 = vmatprep.subr.mxu0 0.0
  %1165 = vmatpush1.msra.mxu0 0.0
  %1166 = vmatprep.subr.mxu0 0.0
  %1167 = vmatpush1.msra.mxu0 0.0
  %1168 = vmatprep.subr.mxu0 0.0
  %1169 = vmatpush1.msra.mxu0 0.0
  %1170 = vmatprep.subr.mxu0 0.0
  %1171 = vmatpush1.msra.mxu0 0.0
  %1172 = vmatprep.subr.mxu0 0.0
  %1173 = vmatpush1.msra.mxu0 0.0
  %1174 = vmatprep.subr.mxu0 0.0
  %1175 = vmatpush1.msra.mxu0 0.0
  %1176 = vmatprep.subr.mxu0 0.0
  %1177 = vmatpush1.msra.mxu0 0.0
  %1178 = vmatprep.subr.mxu0 0.0
  %1179 = vmatpush1.msra.mxu0 0.0
  %1180 = vmatprep.subr.mxu0 0.0
  %1181 = vmatpush1.msra.mxu0 0.0
  %1182 = vmatprep.subr.mxu0 0.0
  %1183 = vmatpush1.msra.mxu0 0.0
  %1184 = vmatprep.subr.mxu0 0.0
  %1185 = vmatpush1.msra.mxu0 0.0
  %1186 = vmatprep.subr.mxu0 0.0
  %1187 = vmatpush1.msra.mxu0 0.0
  %1188 = vmatprep.subr.mxu0 0.0
  %1189 = vmatpush1.msra.mxu0 0.0
  %1190 = vmatprep.subr.mxu0 0.0
  %1191 = vmatpush1.msra.mxu0 0.0
  %1192 = vmatprep.subr.mxu0 0.0
  %1193 = vmatpush1.msra.mxu0 0.0
  %1194 = vmatprep.subr.mxu0 0.0
  %1195 = vmatpush1.msra.mxu0 0.0
  %1196 = vmatprep.subr.mxu0 0.0
  %1197 = vmatpush1.msra.mxu0 0.0
  %1198 = vmatprep.subr.mxu0 0.0
  %1199 = vmatpush1.msra.mxu0 0.0
  %1200 = vmatprep.subr.mxu0 0.0
  %1201 = vmatpush1.msra.mxu0 0.0
  %1202 = vmatprep.subr.mxu0 0.0
  %1203 = vmatpush1.msra.mxu0 0.0
  %1204 = vmatprep.subr.mxu0 0.0
  %1205 = vmatpush1.msra.mxu0 0.0
  %1206 = vmatprep.subr.mxu0 0.0
  %1207 = vmatpush1.msra.mxu0 0.0
  %1208 = vmatprep.subr.mxu0 0.0
  %1209 = vmatpush1.msra.mxu0 0.0
  %1210 = vmatprep.subr.mxu0 0.0
  %1211 = vmatpush1.msra.mxu0 0.0
  %1212 = vmatprep.subr.mxu0 0.0
  %1213 = vmatpush1.msra.mxu0 0.0
  %1214 = vmatprep.mubr.f32.mxu0 0.0
  %1215 = vmatmul.mubr.f32.gmra.mrb[0].mxu0 %v1145
  %v1216 = vpop.f32.mrb[0].mxu0
  %v1217 = vadd.f32 0.0, %v1216
  %v1218 = vpop.f32.mrb[0].mxu0
  %1219 = vmatprep.mubr.f32.mxu0 0.0
  %1220 = vmatmul.mubr.f32.gmra.mrb[0].mxu0 %v1148
  %v1221 = vpop.f32.mrb[0].mxu0
  %v1222 = vadd.f32 0.0, %v1221
  %v1223 = vpop.f32.mrb[0].mxu0
  %1224 = vdwg.mxu0
  %v1225 = vsel %vm412, %v1217, 0.0
  %v1226 = vsel %vm412, %v1222, 0.0
  %v1227 = vadd.f32 %v1225, %v1226
  %v1228 = vrot.slane %v1227, 4
  %v1229 = vadd.f32 %v1227, %v1228
  %v1230 = vrot.slane %v1229, 2
  %v1231 = vadd.f32 %v1229, %v1230
  %v1232 = vrot.slane %v1231, 1
  %v1233 = vadd.f32 %v1231, %v1232
  %v1234 = vmul.f32 %v1233, 0.0625
  %v1235 = vmul.f32 %v1217, %v1217
  %v1236 = vmul.f32 %v1222, %v1222
  %v1237 = vsel %vm412, %v1235, 0.0
  %v1238 = vsel %vm412, %v1236, 0.0
  %v1239 = vadd.f32 %v1237, %v1238
  %v1240 = vrot.slane %v1239, 4
  %v1241 = vadd.f32 %v1239, %v1240
  %v1242 = vrot.slane %v1241, 2
  %v1243 = vadd.f32 %v1241, %v1242
  %v1244 = vrot.slane %v1243, 1
  %v1245 = vadd.f32 %v1243, %v1244
  %v1246 = vmul.f32 %v1245, 0.0625
  %v1247 = vmul.f32 %v1234, %v1234
  %v1248 = vsub.f32 %v1246, %v1247
  %v1249 = vadd.f32 %v1248, 1e-05
  %v1250 = vrsqrt.pop %v1249
  %v1251 = vsub.f32 %v1217, %v1234
  %v1252 = vsub.f32 %v1222, %v1234
  %v1253 = vmul.f32 %v1251, %v1250
  %v1254 = vmul.f32 %v1252, %v1250
  %v1255 = vmax.f32 %v1253, 0.0
  %v1256 = vmax.f32 %v1254, 0.0
  %v1258 = vsel %vm412, %v1255, 0
  %v1261 = vsel %vm412, %v1256, 0
  %1263 = vmatprep.subr.mxu0 0.0
  %1264 = vmatpush1.msra.mxu0 %v141
  %1265 = vmatprep.subr.mxu0 0.0
  %1266 = vmatpush1.msra.mxu0 %v142
  %1267 = vmatprep.subr.mxu0 0.0
  %1268 = vmatpush1.msra.mxu0 %v143
  %1269 = vmatprep.subr.mxu0 0.0
  %1270 = vmatpush1.msra.mxu0 %v144
  %1271 = vmatprep.subr.mxu0 0.0
  %1272 = vmatpush1.msra.mxu0 0.0
  %1273 = vmatprep.subr.mxu0 0.0
  %1274 = vmatpush1.msra.mxu0 0.0
  %1275 = vmatprep.subr.mxu0 0.0
  %1276 = vmatpush1.msra.mxu0 0.0
  %1277 = vmatprep.subr.mxu0 0.0
  %1278 = vmatpush1.msra.mxu0 0.0
  %1279 = vmatprep.subr.mxu0 0.0
  %1280 = vmatpush1.msra.mxu0 0.0
  %1281 = vmatprep.subr.mxu0 0.0
  %1282 = vmatpush1.msra.mxu0 0.0
  %1283 = vmatprep.subr.mxu0 0.0
  %1284 = vmatpush1.msra.mxu0 0.0
  %1285 = vmatprep.subr.mxu0 0.0
  %1286 = vmatpush1.msra.mxu0 0.0
  %1287 = vmatprep.subr.mxu0 0.0
  %1288 = vmatpush1.msra.mxu0 0.0
  %1289 = vmatprep.subr.mxu0 0.0
  %1290 = vmatpush1.msra.mxu0 0.0
  %1291 = vmatprep.subr.mxu0 0.0
  %1292 = vmatpush1.msra.mxu0 0.0
  %1293 = vmatprep.subr.mxu0 0.0
  %1294 = vmatpush1.msra.mxu0 0.0
  %1295 = vmatprep.subr.mxu0 0.0
  %1296 = vmatpush1.msra.mxu0 0.0
  %1297 = vmatprep.subr.mxu0 0.0
  %1298 = vmatpush1.msra.mxu0 0.0
  %1299 = vmatprep.subr.mxu0 0.0
  %1300 = vmatpush1.msra.mxu0 0.0
  %1301 = vmatprep.subr.mxu0 0.0
  %1302 = vmatpush1.msra.mxu0 0.0
  %1303 = vmatprep.subr.mxu0 0.0
  %1304 = vmatpush1.msra.mxu0 0.0
  %1305 = vmatprep.subr.mxu0 0.0
  %1306 = vmatpush1.msra.mxu0 0.0
  %1307 = vmatprep.subr.mxu0 0.0
  %1308 = vmatpush1.msra.mxu0 0.0
  %1309 = vmatprep.subr.mxu0 0.0
  %1310 = vmatpush1.msra.mxu0 0.0
  %1311 = vmatprep.subr.mxu0 0.0
  %1312 = vmatpush1.msra.mxu0 0.0
  %1313 = vmatprep.subr.mxu0 0.0
  %1314 = vmatpush1.msra.mxu0 0.0
  %1315 = vmatprep.subr.mxu0 0.0
  %1316 = vmatpush1.msra.mxu0 0.0
  %1317 = vmatprep.subr.mxu0 0.0
  %1318 = vmatpush1.msra.mxu0 0.0
  %1319 = vmatprep.subr.mxu0 0.0
  %1320 = vmatpush1.msra.mxu0 0.0
  %1321 = vmatprep.subr.mxu0 0.0
  %1322 = vmatpush1.msra.mxu0 0.0
  %1323 = vmatprep.subr.mxu0 0.0
  %1324 = vmatpush1.msra.mxu0 0.0
  %1325 = vmatprep.subr.mxu0 0.0
  %1326 = vmatpush1.msra.mxu0 0.0
  %1327 = vmatprep.mubr.f32.mxu0 0.0
  %1328 = vmatmul.mubr.f32.gmra.mrb[0].mxu0 %v1258
  %v1329 = vpop.f32.mrb[0].mxu0
  %v1330 = vadd.f32 0.0, %v1329
  %v1331 = vpop.f32.mrb[0].mxu0
  %1332 = vmatprep.mubr.f32.mxu0 0.0
  %1333 = vmatmul.mubr.f32.gmra.mrb[0].mxu0 %v1261
  %v1334 = vpop.f32.mrb[0].mxu0
  %v1335 = vadd.f32 0.0, %v1334
  %v1336 = vpop.f32.mrb[0].mxu0
  %1337 = vdwg.mxu0
  %v1338 = vsel %vm412, %v1330, 0.0
  %v1339 = vsel %vm412, %v1335, 0.0
  %v1340 = vadd.f32 %v1338, %v1339
  %v1341 = vrot.slane %v1340, 4
  %v1342 = vadd.f32 %v1340, %v1341
  %v1343 = vrot.slane %v1342, 2
  %v1344 = vadd.f32 %v1342, %v1343
  %v1345 = vrot.slane %v1344, 1
  %v1346 = vadd.f32 %v1344, %v1345
  %v1347 = vmul.f32 %v1346, 0.0625
  %v1348 = vmul.f32 %v1330, %v1330
  %v1349 = vmul.f32 %v1335, %v1335
  %v1350 = vsel %vm412, %v1348, 0.0
  %v1351 = vsel %vm412, %v1349, 0.0
  %v1352 = vadd.f32 %v1350, %v1351
  %v1353 = vrot.slane %v1352, 4
  %v1354 = vadd.f32 %v1352, %v1353
  %v1355 = vrot.slane %v1354, 2
  %v1356 = vadd.f32 %v1354, %v1355
  %v1357 = vrot.slane %v1356, 1
  %v1358 = vadd.f32 %v1356, %v1357
  %v1359 = vmul.f32 %v1358, 0.0625
  %v1360 = vmul.f32 %v1347, %v1347
  %v1361 = vsub.f32 %v1359, %v1360
  %v1362 = vadd.f32 %v1361, 1e-05
  %v1363 = vrsqrt.pop %v1362
  %v1364 = vsub.f32 %v1330, %v1347
  %v1365 = vsub.f32 %v1335, %v1347
  %v1366 = vmul.f32 %v1364, %v1363
  %v1367 = vmul.f32 %v1365, %v1363
  %v1368 = vmax.f32 %v1366, 0.0
  %v1369 = vmax.f32 %v1367, 0.0
  %v1370 = vlaneseq
  %v1371 = vshrl.u32 %v1370, 7
  %v1372 = vsub.s32 0, %v1371
  %v1373 = vrot.slane %v145, %v1372
  %v1374 = vmul.f32 %v1368, %v1373
  %v1375 = vmul.f32 %v1369, %v1373
  %v1376 = vsel %vm412, %v1374, 0.0
  %1377 = vadd.xlane.f32.xlu0 %v1376
  %v1378 = vpop.xlane.xlu0 %1377
  %v1379 = vsel %vm412, %v1375, 0.0
  %1380 = vadd.xlane.f32.xlu0 %v1379
  %v1381 = vpop.xlane.xlu0 %1380
  %v1382 = vlaneseq
  %v1383 = vshrl.u32 %v1382, 7
  %v1384 = vsub.s32 0, %v1383
  %v1385 = vrot.slane %v147, %v1384
  %v1386 = vadd.f32 %v1378, %v1385
  %v1387 = vadd.f32 %v1381, %v1385
  %v1388 = vxor.u32 %v1386, 2147483648
  %v1389 = vxor.u32 %v1387, 2147483648
  %v1390 = vmul.f32 %v1388, 1.442695
  %v1391 = vpow.pop %v1390
  %v1392 = vmul.f32 %v1389, 1.442695
  %v1393 = vpow.pop %v1392
  %v1394 = vadd.f32 %v1391, 1.0
  %v1395 = vadd.f32 %v1393, 1.0
  %v1396 = vrcp.pop %v1394
  %v1397 = vmul.f32 1.0, %v1396
  %v1398 = vrcp.pop %v1395
  %v1399 = vmul.f32 1.0, %v1398
  %vm1400 = vcmask 7168
  %1401 = vst.msk [vmem:[%s5] sm:$0xff] %vm1400, %v1397
  %1402 = vst.msk [vmem:[%s5 + $0x8] sm:$0xff] %vm1400, %v1399
  // Predicated region
  $region22: #{forward.1} parent=0 // pred_check
    _
  $region23: #{forward.1} parent=0 // pred_check_branch
    %1404 = sbr.rel (0) target = $region25
  $region24: #{forward.1} parent=0 // pred_region
    _
  $region25: #{forward.1} parent=0 // pred_fallthru
    _
  // Predicated region
  $region26: #{forward.1} parent=0 // pred_check
    _
  $region27: #{forward.1} parent=0 // pred_check_branch
    %1406 = sbr.rel (0) target = $region29
  $region28: #{forward.1} parent=0 // pred_region
    _
  $region29: #{forward.1} parent=0 // pred_fallthru
    _

</llo_original>
